<compile_context>
chip_gen: v7x
topology: tpu7x:2x2x1
jax: 0.10.0
libtpu: 0.0.40
codegen_flags: <defaults>
</compile_context>

<pallas_src>
import functools
import math

import jax
import jax.numpy as jnp
from jax import lax
from jax.experimental import pallas as pl
from jax.experimental.pallas import tpu as pltpu

_LN_EPS = 1e-5                      # torch.nn.LayerNorm default eps
_SQRT_2_OVER_PI = 0.7978845608028654


def _round_up(x, m):
    return ((x + m - 1) // m) * m


def _gelu_tanh(x):
    # tanh-approximate GELU (EUP tanh + a few VALU ops).
    return 0.5 * x * (1.0 + jnp.tanh(_SQRT_2_OVER_PI * (x + 0.044715 * x * x * x)))


def _ln_normalize(x):
    # LayerNorm WITHOUT affine (affine folded into the following Linear).
    mu = jnp.mean(x, axis=-1, keepdims=True)
    xc = x - mu
    var = jnp.mean(xc * xc, axis=-1, keepdims=True)
    return xc * lax.rsqrt(var + _LN_EPS)


def _query_model_kernel(ft_ref, sd_ref, w1_ref, b1_ref, w2_ref, b2_ref,
                        att_w_ref, att_ft_ref,
                        q_acc_ref,
                        *, tokens_valid, block_tokens, mask_tokens,
                        scale, compute_dtype):
    ti = pl.program_id(1)
    last = pl.num_programs(1) - 1

    @pl.when(ti == 0)
    def _():
        q_acc_ref[...] = jnp.zeros_like(q_acc_ref)

    bb, tt, f = ft_ref.shape
    x = ft_ref[...].reshape(bb * tt, f).astype(jnp.float32)

    # ---- q_map with LN affines folded into the Linear weights ----
    xh = _ln_normalize(x)                                            # f32
    h = jnp.dot(xh.astype(compute_dtype), w1_ref[...],
                preferred_element_type=jnp.float32) + b1_ref[...]    # [rows, D]
    h = _gelu_tanh(h)
    hh = _ln_normalize(h)
    q = jnp.dot(hh.astype(compute_dtype), w2_ref[...],
                preferred_element_type=jnp.float32) + b2_ref[...]    # [rows, D]
    q3 = q.reshape(bb, tt, q.shape[-1])

    # ---- pool_type='sum': accumulate sum_t q into the f32 scratch ----
    def _accumulate(apply_mask):
        if apply_mask:
            tok = ti * block_tokens + lax.broadcasted_iota(
                jnp.int32, (bb, tt, 1), 1)
            q3m = jnp.where(tok < tokens_valid, q3, 0.0)
            q_acc_ref[...] += jnp.sum(q3m, axis=1)
        else:
            q_acc_ref[...] += jnp.sum(q3, axis=1)

    if mask_tokens:  # static: T was padded -> mask only on the LAST token tile
        @pl.when(ti == last)
        def _():
            _accumulate(True)

        @pl.when(ti != last)
        def _():
            _accumulate(False)
    else:
        _accumulate(False)

    # ---- finalize once per batch tile: sd dot, sparsemax, att_ft (all f32) ----
    @pl.when(ti == last)
    def _():
        q_sum = q_acc_ref[...]                                       # [bb, D] f32
        z = lax.dot_general(q_sum, sd_ref[...],
                            (((1,), (1,)), ((), ())),
                            preferred_element_type=jnp.float32) * scale  # [bb, S]

        # Exact, sort-free sparsemax (comparison-count form).  O(S^2) work is
        # fine while S stays small; switch to a sorted/cumsum form if S >~128.
        zi = z[:, :, None]
        zj = z[:, None, :]
        ge = (zj >= zi).astype(jnp.float32)
        k_i = jnp.sum(ge, axis=-1)
        s_i = jnp.sum(ge * zj, axis=-1)
        support = (1.0 + k_i * z > s_i).astype(jnp.float32)
        k_star = jnp.sum(support, axis=-1, keepdims=True)
        s_star = jnp.sum(support * z, axis=-1, keepdims=True)
        tau = (s_star - 1.0) / k_star
        p = jnp.maximum(z - tau, 0.0)                                # [bb, S]

        att_w_ref[...] = p.astype(att_w_ref.dtype)
        att_ft_ref[...] = jnp.dot(p, sd_ref[...],
                                  preferred_element_type=jnp.float32
                                  ).astype(att_ft_ref.dtype)


def query_model_forward(ft, sd, params, temperature=1.0, *,
                        block_batch=None, block_tokens=None,
                        compute_dtype=jnp.bfloat16):
    """ft: [B, T, ft_dim], sd: [S, sd_dim].  Returns (att_weight, att_ft, sd)."""
    B, T, F = ft.shape
    S, D = sd.shape

    ft_itemsize = jnp.dtype(ft.dtype).itemsize
    cbytes = jnp.dtype(compute_dtype).itemsize

    # ---- generation-aware VMEM budget (v7x: 64 MiB physical; v5e/v6e: 128) --
    try:
        info = pltpu.get_tpu_info()
        cap = int(getattr(info, "vmem_capacity_bytes", 64 * 1024 * 1024))
    except Exception:  # no devices / API unavailable -> be conservative (v7x)
        cap = 64 * 1024 * 1024
    if cap >= 128 * 1024 * 1024:
        vmem_limit = 100 * 1024 * 1024   # v5e / v6e: use most of 128 MiB
    else:
        vmem_limit = 48 * 1024 * 1024    # v7x: stay well under 64 MiB
    budget = int(vmem_limit * 0.85)      # headroom for compiler scratch

    # ---- tile selection ------------------------------------------------------
    sub = {4: 8, 2: 16, 1: 32}.get(ft_itemsize, 8)   # ft sublane multiple
    T_full = _round_up(T, sub)
    if block_tokens is None:
        tt = min(T_full, 512)
    else:
        tt = max(sub, min(_round_up(block_tokens, sub), T_full))

    B_full = _round_up(B, 8)
    if block_batch is None:
        target_rows = 1024                       # ~1024 rows per grid step
        bb = max(8, min(_round_up(max(target_rows // tt, 1), 8), B_full))
        # keep >= 2 batch tiles when the batch allows it (v7x megacore)
        if bb >= B_full and B_full > 8:
            bb = max(8, _round_up(B_full // 2, 8))
    else:
        bb = max(8, min(_round_up(block_batch, 8), B_full))

    def _est_vmem(bb_, tt_):
        rows = bb_ * tt_
        resident = 2 * (F * D + D * D) * cbytes + 2 * S * D * 4 + 4 * D * 4
        ft_tiles = 2 * rows * F * ft_itemsize          # double-buffered input
        inter = rows * (F * (2 * 4 + cbytes) + D * (3 * 4 + cbytes))
        outs = 2 * 2 * bb_ * (S + D) * 4
        scratch = bb_ * D * 4
        return resident + ft_tiles + inter + outs + scratch

    while _est_vmem(bb, tt) > budget and tt > sub:
        tt = max(sub, _round_up(tt // 2, sub))
    while _est_vmem(bb, tt) > budget and bb > 8:
        bb = max(8, _round_up(bb // 2, 8))

    T_pad = _round_up(T, tt)
    B_pad = _round_up(B, bb)

    ft_p = ft
    if (B_pad, T_pad) != (B, T):
        ft_p = jnp.pad(ft, ((0, B_pad - B), (0, T_pad - T), (0, 0)))

    # ---- fold LN affines into the Linear weights (one-time, tiny) -----------
    w1 = params["w1"].astype(jnp.float32)                   # [F, D] (x @ W)
    w2 = params["w2"].astype(jnp.float32)                   # [D, D]
    g1 = params["ln1_g"].astype(jnp.float32)
    b1 = params["ln1_b"].astype(jnp.float32)
    g2 = params["ln2_g"].astype(jnp.float32)
    b2 = params["ln2_b"].astype(jnp.float32)
    w1f = (g1[:, None] * w1).astype(compute_dtype)
    b1f = (params["b1"].astype(jnp.float32) + b1 @ w1).reshape(1, D)
    w2f = (g2[:, None] * w2).astype(compute_dtype)
    b2f = (params["b2"].astype(jnp.float32) + b2 @ w2).reshape(1, D)
    sd_f = sd.astype(jnp.float32)                            # f32: used only in
    #                                                          the tiny finalize

    grid = (B_pad // bb, T_pad // tt)
    const = lambda bi, ti: (0, 0)

    kernel = functools.partial(
        _query_model_kernel,
        tokens_valid=T,
        block_tokens=tt,
        mask_tokens=(T_pad != T),
        scale=float(1.0 / math.sqrt(D) / temperature),
        compute_dtype=compute_dtype)

    att_w, att_ft = pl.pallas_call(
        kernel,
        out_shape=(jax.ShapeDtypeStruct((B_pad, S), jnp.float32),
                   jax.ShapeDtypeStruct((B_pad, D), jnp.float32)),
        grid_spec=pltpu.PrefetchScalarGridSpec(
            num_scalar_prefetch=0,
            grid=grid,
            in_specs=[
                pl.BlockSpec((bb, tt, F), lambda bi, ti: (bi, ti, 0)),  # ft tiles
                pl.BlockSpec((S, D), const),                 # sd   (resident, f32)
                pl.BlockSpec((F, D), const),                 # w1'  (resident)
                pl.BlockSpec((1, D), const),                 # b1'
                pl.BlockSpec((D, D), const),                 # w2'
                pl.BlockSpec((1, D), const),                 # b2'
            ],
            out_specs=[
                pl.BlockSpec((bb, S), lambda bi, ti: (bi, 0)),
                pl.BlockSpec((bb, D), lambda bi, ti: (bi, 0)),
            ],
            scratch_shapes=[pltpu.VMEM((bb, D), jnp.float32)],
        ),
        compiler_params=pltpu.CompilerParams(
            dimension_semantics=("parallel", "arbitrary"),
            vmem_limit_bytes=vmem_limit,
        ),
    )(ft_p, sd_f, w1f, b1f, w2f, b2f)

    return att_w[:B], att_ft[:B], sd


# ----------------- pure-JAX reference (sanity check only) -----------------
def _sparsemax_ref(z):
    z_sorted = jnp.sort(z, axis=-1)[..., ::-1]
    k = jnp.arange(1, z.shape[-1] + 1, dtype=z.dtype)
    cs = jnp.cumsum(z_sorted, axis=-1)
    support = (1.0 + k * z_sorted) > cs
    k_star = jnp.sum(support.astype(z.dtype), axis=-1, keepdims=True)
    idx = (k_star - 1.0).astype(jnp.int32)
    s_star = jnp.take_along_axis(cs, idx, axis=-1)
    tau = (s_star - 1.0) / k_star
    return jnp.maximum(z - tau, 0.0)


def _query_model_ref(ft, sd, params, temperature=1.0, approximate_gelu=False):
    def ln(x, g, b):
        mu = x.mean(-1, keepdims=True)
        var = ((x - mu) ** 2).mean(-1, keepdims=True)
        return (x - mu) / jnp.sqrt(var + _LN_EPS) * g + b

    h = ln(ft.astype(jnp.float32), params["ln1_g"], params["ln1_b"])
    h = h @ params["w1"] + params["b1"]
    h = jax.nn.gelu(h, approximate=approximate_gelu)
    h = ln(h, params["ln2_g"], params["ln2_b"])
    q = h @ params["w2"] + params["b2"]
    inner = jnp.einsum("btd,sd->bts", q, sd) / math.sqrt(sd.shape[1]) / temperature
    z = inner.sum(axis=1)
    w = _sparsemax_ref(z)
    return w, w @ sd, sd


if __name__ == "__main__":
    # Small shapes: batch=16, tokens=12 (padded to 16 in-kernel), ft_dim=32,
    # SST_num=8, sd_dim=32.
    B, T, FT_DIM, SST_NUM, SD_DIM = 16, 12, 32, 8, 32

    key = jax.random.PRNGKey(0)
    ks = jax.random.split(key, 9)
    ft = jax.random.normal(ks[0], (B, T, FT_DIM), jnp.float32)
    sd = jax.random.normal(ks[1], (SST_NUM, SD_DIM), jnp.float32)

    params = dict(
        ln1_g=1.0 + 0.1 * jax.random.normal(ks[2], (FT_DIM,), jnp.float32),
        ln1_b=0.1 * jax.random.normal(ks[3], (FT_DIM,), jnp.float32),
        w1=0.1 * jax.random.normal(ks[4], (FT_DIM, SD_DIM), jnp.float32),
        b1=0.05 * jax.random.normal(ks[5], (SD_DIM,), jnp.float32),
        ln2_g=1.0 + 0.1 * jax.random.normal(ks[6], (SD_DIM,), jnp.float32),
        ln2_b=0.1 * jax.random.normal(ks[7], (SD_DIM,), jnp.float32),
        w2=0.1 * jax.random.normal(ks[8], (SD_DIM, SD_DIM), jnp.float32),
        b2=jnp.zeros((SD_DIM,), jnp.float32),
    )

    # References: exact erf-GELU (module semantics) and tanh-GELU (kernel).
    rw_exact, rft_exact, _ = _query_model_ref(ft, sd, params)
    rw_tanh, rft_tanh, _ = _query_model_ref(ft, sd, params, approximate_gelu=True)

    # 1) Default path: bf16 MXU operands, automatic (VMEM-aware) tile selection.
    att_w, att_ft, sd_out = query_model_forward(ft, sd, params, temperature=1.0)
    jax.block_until_ready((att_w, att_ft))
    assert att_w.shape == (B, SST_NUM) and att_ft.shape == (B, SD_DIM)
    assert jnp.max(jnp.abs(att_w - rw_exact)) < 2.5e-1
    assert jnp.max(jnp.abs(att_ft - rft_exact)) < 2.5e-1

    # 2) f32 path with explicit small tiles: grid (2, 2) exercises the
    #    token-axis accumulation, the last-tile-only mask, and megacore split.
    att_w32, att_ft32, _ = query_model_forward(
        ft, sd, params, temperature=1.0,
        block_batch=8, block_tokens=8, compute_dtype=jnp.float32)
    jax.block_until_ready((att_w32, att_ft32))
    assert jnp.max(jnp.abs(att_w32 - rw_tanh)) < 2e-3    # tight vs tanh-GELU ref
    assert jnp.max(jnp.abs(att_ft32 - rft_tanh)) < 2e-3
    assert jnp.max(jnp.abs(att_w32 - rw_exact)) < 5e-2   # loose vs erf-GELU ref
    assert jnp.max(jnp.abs(att_ft32 - rft_exact)) < 5e-2

    print("KERNEL_OK")
</pallas_src>

<mosaic_0001>
module attributes {stable_mosaic.version = 11 : i64} {
  func.func @_query_model_kernel(%arg0: i32, %arg1: i32, %arg2: memref<8x16x32xf32, #tpu.memory_space<vmem>>, %arg3: memref<8x32xf32, #tpu.memory_space<vmem>>, %arg4: memref<32x32xbf16, #tpu.memory_space<vmem>>, %arg5: memref<1x32xf32, #tpu.memory_space<vmem>>, %arg6: memref<32x32xbf16, #tpu.memory_space<vmem>>, %arg7: memref<1x32xf32, #tpu.memory_space<vmem>>, %arg8: memref<8x8xf32, #tpu.memory_space<vmem>>, %arg9: memref<8x32xf32, #tpu.memory_space<vmem>>, %arg10: memref<8x32xf32, #tpu.memory_space<vmem>>) attributes {dimension_semantics = [#tpu.dimension_semantics<parallel>, #tpu.dimension_semantics<arbitrary>], iteration_bounds = array<i64: 2, 1>, scalar_prefetch = 0 : i64, scratch_operands = 1 : i64, tpu.core_type = #tpu.core_type<tc>, window_params = [{transform_indices = @transform_0, window_bounds = array<i64: 8, 16, 32>}, {pipeline_mode = #tpu.pipeline_mode<synchronous>, transform_indices = @transform_1, window_bounds = array<i64: 8, 32>}, {pipeline_mode = #tpu.pipeline_mode<synchronous>, transform_indices = @transform_2, window_bounds = array<i64: 32, 32>}, {pipeline_mode = #tpu.pipeline_mode<synchronous>, transform_indices = @transform_3, window_bounds = array<i64: 1, 32>}, {pipeline_mode = #tpu.pipeline_mode<synchronous>, transform_indices = @transform_4, window_bounds = array<i64: 32, 32>}, {pipeline_mode = #tpu.pipeline_mode<synchronous>, transform_indices = @transform_5, window_bounds = array<i64: 1, 32>}, {transform_indices = @transform_6, window_bounds = array<i64: 8, 8>}, {transform_indices = @transform_7, window_bounds = array<i64: 8, 32>}]} {
    %c0_i32 = arith.constant 0 : i32
    %0 = arith.cmpi eq, %arg1, %c0_i32 : i32
    %1 = arith.extui %0 : i1 to i32
    %c0_i32_0 = arith.constant 0 : i32
    %2 = arith.cmpi ne, %1, %c0_i32_0 : i32
    scf.if %2 {
      %cst_32 = arith.constant 0.000000e+00 : f32
      %72 = vector.broadcast %cst_32 : f32 to vector<8x32xf32>
      %c0_33 = arith.constant 0 : index
      %c0_34 = arith.constant 0 : index
      %73 = vector.load %arg10[%c0_33, %c0_34] : memref<8x32xf32, #tpu.memory_space<vmem>>, vector<8x32xf32>
      tpu.vector_store %arg10[%c0_33, %c0_34], %72 {strides = array<i32>} : memref<8x32xf32, #tpu.memory_space<vmem>>, vector<8x32xf32>,
    } else {
    }
    %c0 = arith.constant 0 : index
    %c0_1 = arith.constant 0 : index
    %c0_2 = arith.constant 0 : index
    %3 = vector.load %arg2[%c0, %c0_1, %c0_2] : memref<8x16x32xf32, #tpu.memory_space<vmem>>, vector<8x16x32xf32>
    %4 = vector.shape_cast %3 : vector<8x16x32xf32> to vector<128x32xf32>
    %cst = arith.constant dense<0.000000e+00> : vector<128xf32>
    %5 = vector.multi_reduction <add>, %4, %cst [1] : vector<128x32xf32> to vector<128xf32>
    %6 = vector.shape_cast %5 : vector<128xf32> to vector<128x1xf32>
    %cst_3 = arith.constant 3.200000e+01 : f32
    %7 = vector.broadcast %cst_3 : f32 to vector<128x1xf32>
    %8 = arith.divf %6, %7 : vector<128x1xf32>
    %9 = vector.broadcast %8 : vector<128x1xf32> to vector<128x32xf32>
    %10 = arith.subf %4, %9 : vector<128x32xf32>
    %11 = arith.mulf %10, %10 : vector<128x32xf32>
    %cst_4 = arith.constant dense<0.000000e+00> : vector<128xf32>
    %12 = vector.multi_reduction <add>, %11, %cst_4 [1] : vector<128x32xf32> to vector<128xf32>
    %13 = vector.shape_cast %12 : vector<128xf32> to vector<128x1xf32>
    %cst_5 = arith.constant 3.200000e+01 : f32
    %14 = vector.broadcast %cst_5 : f32 to vector<128x1xf32>
    %15 = arith.divf %13, %14 : vector<128x1xf32>
    %cst_6 = arith.constant 9.99999974E-6 : f32
    %16 = vector.broadcast %cst_6 : f32 to vector<128x1xf32>
    %17 = arith.addf %15, %16 : vector<128x1xf32>
    %18 = math.rsqrt %17 : vector<128x1xf32>
    %19 = vector.broadcast %18 : vector<128x1xf32> to vector<128x32xf32>
    %20 = arith.mulf %10, %19 : vector<128x32xf32>
    %21 = arith.truncf %20 : vector<128x32xf32> to vector<128x32xbf16>
    %c0_7 = arith.constant 0 : index
    %c0_8 = arith.constant 0 : index
    %22 = vector.load %arg4[%c0_7, %c0_8] : memref<32x32xbf16, #tpu.memory_space<vmem>>, vector<32x32xbf16>
    %cst_9 = arith.constant dense<0.000000e+00> : vector<128x32xf32>
    %23 = tpu.matmul %21, %22, %cst_9 {dimension_numbers = #tpu.dot_dimension_numbers<[1], [0], [0], [1], [0, 0, 1, 1], [], []>} : vector<128x32xbf16>, vector<32x32xbf16>, vector<128x32xf32> -> vector<128x32xf32>
    %c0_10 = arith.constant 0 : index
    %c0_11 = arith.constant 0 : index
    %24 = vector.load %arg5[%c0_10, %c0_11] : memref<1x32xf32, #tpu.memory_space<vmem>>, vector<1x32xf32>
    %25 = vector.broadcast %24 : vector<1x32xf32> to vector<128x32xf32>
    %26 = arith.addf %23, %25 : vector<128x32xf32>
    %cst_12 = arith.constant 5.000000e-01 : f32
    %27 = vector.broadcast %cst_12 : f32 to vector<128x32xf32>
    %28 = arith.mulf %27, %26 : vector<128x32xf32>
    %cst_13 = arith.constant 4.471500e-02 : f32
    %29 = vector.broadcast %cst_13 : f32 to vector<128x32xf32>
    %30 = arith.mulf %29, %26 : vector<128x32xf32>
    %31 = arith.mulf %30, %26 : vector<128x32xf32>
    %32 = arith.mulf %31, %26 : vector<128x32xf32>
    %33 = arith.addf %26, %32 : vector<128x32xf32>
    %cst_14 = arith.constant 0.797884583 : f32
    %34 = vector.broadcast %cst_14 : f32 to vector<128x32xf32>
    %35 = arith.mulf %34, %33 : vector<128x32xf32>
    %36 = math.tanh %35 : vector<128x32xf32>
    %cst_15 = arith.constant 1.000000e+00 : f32
    %37 = vector.broadcast %cst_15 : f32 to vector<128x32xf32>
    %38 = arith.addf %37, %36 : vector<128x32xf32>
    %39 = arith.mulf %28, %38 : vector<128x32xf32>
    %cst_16 = arith.constant dense<0.000000e+00> : vector<128xf32>
    %40 = vector.multi_reduction <add>, %39, %cst_16 [1] : vector<128x32xf32> to vector<128xf32>
    %41 = vector.shape_cast %40 : vector<128xf32> to vector<128x1xf32>
    %cst_17 = arith.constant 3.200000e+01 : f32
    %42 = vector.broadcast %cst_17 : f32 to vector<128x1xf32>
    %43 = arith.divf %41, %42 : vector<128x1xf32>
    %44 = vector.broadcast %43 : vector<128x1xf32> to vector<128x32xf32>
    %45 = arith.subf %39, %44 : vector<128x32xf32>
    %46 = arith.mulf %45, %45 : vector<128x32xf32>
    %cst_18 = arith.constant dense<0.000000e+00> : vector<128xf32>
    %47 = vector.multi_reduction <add>, %46, %cst_18 [1] : vector<128x32xf32> to vector<128xf32>
    %48 = vector.shape_cast %47 : vector<128xf32> to vector<128x1xf32>
    %cst_19 = arith.constant 3.200000e+01 : f32
    %49 = vector.broadcast %cst_19 : f32 to vector<128x1xf32>
    %50 = arith.divf %48, %49 : vector<128x1xf32>
    %cst_20 = arith.constant 9.99999974E-6 : f32
    %51 = vector.broadcast %cst_20 : f32 to vector<128x1xf32>
    %52 = arith.addf %50, %51 : vector<128x1xf32>
    %53 = math.rsqrt %52 : vector<128x1xf32>
    %54 = vector.broadcast %53 : vector<128x1xf32> to vector<128x32xf32>
    %55 = arith.mulf %45, %54 : vector<128x32xf32>
    %56 = arith.truncf %55 : vector<128x32xf32> to vector<128x32xbf16>
    %c0_21 = arith.constant 0 : index
    %c0_22 = arith.constant 0 : index
    %57 = vector.load %arg6[%c0_21, %c0_22] : memref<32x32xbf16, #tpu.memory_space<vmem>>, vector<32x32xbf16>
    %cst_23 = arith.constant dense<0.000000e+00> : vector<128x32xf32>
    %58 = tpu.matmul %56, %57, %cst_23 {dimension_numbers = #tpu.dot_dimension_numbers<[1], [0], [0], [1], [0, 0, 1, 1], [], []>} : vector<128x32xbf16>, vector<32x32xbf16>, vector<128x32xf32> -> vector<128x32xf32>
    %c0_24 = arith.constant 0 : index
    %c0_25 = arith.constant 0 : index
    %59 = vector.load %arg7[%c0_24, %c0_25] : memref<1x32xf32, #tpu.memory_space<vmem>>, vector<1x32xf32>
    %60 = vector.broadcast %59 : vector<1x32xf32> to vector<128x32xf32>
    %61 = arith.addf %58, %60 : vector<128x32xf32>
    %62 = vector.shape_cast %61 : vector<128x32xf32> to vector<8x16x32xf32>
    %c0_i32_26 = arith.constant 0 : i32
    %63 = arith.cmpi eq, %arg1, %c0_i32_26 : i32
    %64 = arith.extui %63 : i1 to i32
    %c0_i32_27 = arith.constant 0 : i32
    %65 = arith.cmpi ne, %64, %c0_i32_27 : i32
    scf.if %65 {
      %c16_i32 = arith.constant 16 : i32
      %72 = arith.muli %arg1, %c16_i32 : i32
      %73 = tpu.iota {dimensions = array<i32: 1>} : vector<8x16x1xi32>
      %74 = vector.broadcast %72 : i32 to vector<8x16x1xi32>
      %75 = arith.addi %74, %73 : vector<8x16x1xi32>
      %c12_i32 = arith.constant 12 : i32
      %76 = vector.broadcast %c12_i32 : i32 to vector<8x16x1xi32>
      %77 = arith.cmpi slt, %75, %76 : vector<8x16x1xi32>
      %cst_32 = arith.constant 0.000000e+00 : f32
      %78 = vector.shape_cast %77 : vector<8x16x1xi1> to vector<8x16x1xi1>
      %79 = vector.broadcast %78 : vector<8x16x1xi1> to vector<8x16x32xi1>
      %80 = vector.broadcast %cst_32 : f32 to vector<8x16x32xf32>
      %81 = arith.select %79, %62, %80 : vector<8x16x32xi1>, vector<8x16x32xf32>
      %c0_33 = arith.constant 0 : index
      %c0_34 = arith.constant 0 : index
      %82 = vector.load %arg10[%c0_33, %c0_34] : memref<8x32xf32, #tpu.memory_space<vmem>>, vector<8x32xf32>
      %cst_35 = arith.constant dense<0.000000e+00> : vector<8x32xf32>
      %83 = vector.multi_reduction <add>, %81, %cst_35 [1] : vector<8x16x32xf32> to vector<8x32xf32>
      %84 = arith.addf %82, %83 : vector<8x32xf32>
      %c0_36 = arith.constant 0 : index
      %c0_37 = arith.constant 0 : index
      %85 = vector.load %arg10[%c0_36, %c0_37] : memref<8x32xf32, #tpu.memory_space<vmem>>, vector<8x32xf32>
      tpu.vector_store %arg10[%c0_36, %c0_37], %84 {strides = array<i32>} : memref<8x32xf32, #tpu.memory_space<vmem>>, vector<8x32xf32>,
    } else {
    }
    %c0_i32_28 = arith.constant 0 : i32
    %66 = arith.cmpi ne, %arg1, %c0_i32_28 : i32
    %67 = arith.extui %66 : i1 to i32
    %c0_i32_29 = arith.constant 0 : i32
    %68 = arith.cmpi ne, %67, %c0_i32_29 : i32
    scf.if %68 {
      %c0_32 = arith.constant 0 : index
      %c0_33 = arith.constant 0 : index
      %72 = vector.load %arg10[%c0_32, %c0_33] : memref<8x32xf32, #tpu.memory_space<vmem>>, vector<8x32xf32>
      %cst_34 = arith.constant dense<0.000000e+00> : vector<8x32xf32>
      %73 = vector.multi_reduction <add>, %62, %cst_34 [1] : vector<8x16x32xf32> to vector<8x32xf32>
      %74 = arith.addf %72, %73 : vector<8x32xf32>
      %c0_35 = arith.constant 0 : index
      %c0_36 = arith.constant 0 : index
      %75 = vector.load %arg10[%c0_35, %c0_36] : memref<8x32xf32, #tpu.memory_space<vmem>>, vector<8x32xf32>
      tpu.vector_store %arg10[%c0_35, %c0_36], %74 {strides = array<i32>} : memref<8x32xf32, #tpu.memory_space<vmem>>, vector<8x32xf32>,
    } else {
    }
    %c0_i32_30 = arith.constant 0 : i32
    %69 = arith.cmpi eq, %arg1, %c0_i32_30 : i32
    %70 = arith.extui %69 : i1 to i32
    %c0_i32_31 = arith.constant 0 : i32
    %71 = arith.cmpi ne, %70, %c0_i32_31 : i32
    scf.if %71 {
      %c0_32 = arith.constant 0 : index
      %c0_33 = arith.constant 0 : index
      %72 = vector.load %arg10[%c0_32, %c0_33] : memref<8x32xf32, #tpu.memory_space<vmem>>, vector<8x32xf32>
      %c0_34 = arith.constant 0 : index
      %c0_35 = arith.constant 0 : index
      %73 = vector.load %arg3[%c0_34, %c0_35] : memref<8x32xf32, #tpu.memory_space<vmem>>, vector<8x32xf32>
      %cst_36 = arith.constant dense<0.000000e+00> : vector<8x8xf32>
      %74 = tpu.matmul %72, %73, %cst_36 {dimension_numbers = #tpu.dot_dimension_numbers<[1], [1], [0], [0], [0, 0, 1, 0], [], []>} : vector<8x32xf32>, vector<8x32xf32>, vector<8x8xf32> -> vector<8x8xf32>
      %cst_37 = arith.constant 0.176776692 : f32
      %75 = vector.broadcast %cst_37 : f32 to vector<8x8xf32>
      %76 = arith.mulf %74, %75 : vector<8x8xf32>
      %77 = vector.shape_cast %76 : vector<8x8xf32> to vector<8x8x1xf32>
      %78 = vector.shape_cast %76 : vector<8x8xf32> to vector<8x1x8xf32>
      %79 = vector.broadcast %78 : vector<8x1x8xf32> to vector<8x8x8xf32>
      %80 = vector.broadcast %77 : vector<8x8x1xf32> to vector<8x8x8xf32>
      %81 = arith.cmpf oge, %79, %80 : vector<8x8x8xf32>
      %82 = arith.extui %81 : vector<8x8x8xi1> to vector<8x8x8xi32>
      %83 = arith.sitofp %82 : vector<8x8x8xi32> to vector<8x8x8xf32>
      %cst_38 = arith.constant dense<0.000000e+00> : vector<8x8xf32>
      %84 = vector.multi_reduction <add>, %83, %cst_38 [2] : vector<8x8x8xf32> to vector<8x8xf32>
      %85 = vector.broadcast %78 : vector<8x1x8xf32> to vector<8x8x8xf32>
      %86 = arith.mulf %83, %85 : vector<8x8x8xf32>
      %cst_39 = arith.constant dense<0.000000e+00> : vector<8x8xf32>
      %87 = vector.multi_reduction <add>, %86, %cst_39 [2] : vector<8x8x8xf32> to vector<8x8xf32>
      %88 = arith.mulf %84, %76 : vector<8x8xf32>
      %cst_40 = arith.constant 1.000000e+00 : f32
      %89 = vector.broadcast %cst_40 : f32 to vector<8x8xf32>
      %90 = arith.addf %89, %88 : vector<8x8xf32>
      %91 = arith.cmpf ogt, %90, %87 : vector<8x8xf32>
      %92 = arith.extui %91 : vector<8x8xi1> to vector<8x8xi32>
      %93 = arith.sitofp %92 : vector<8x8xi32> to vector<8x8xf32>
      %cst_41 = arith.constant dense<0.000000e+00> : vector<8xf32>
      %94 = vector.multi_reduction <add>, %93, %cst_41 [1] : vector<8x8xf32> to vector<8xf32>
      %95 = vector.shape_cast %94 : vector<8xf32> to vector<8x1xf32>
      %96 = arith.mulf %93, %76 : vector<8x8xf32>
      %cst_42 = arith.constant dense<0.000000e+00> : vector<8xf32>
      %97 = vector.multi_reduction <add>, %96, %cst_42 [1] : vector<8x8xf32> to vector<8xf32>
      %98 = vector.shape_cast %97 : vector<8xf32> to vector<8x1xf32>
      %cst_43 = arith.constant 1.000000e+00 : f32
      %99 = vector.broadcast %cst_43 : f32 to vector<8x1xf32>
      %100 = arith.subf %98, %99 : vector<8x1xf32>
      %101 = arith.divf %100, %95 : vector<8x1xf32>
      %102 = vector.broadcast %101 : vector<8x1xf32> to vector<8x8xf32>
      %103 = arith.subf %76, %102 : vector<8x8xf32>
      %cst_44 = arith.constant 0.000000e+00 : f32
      %104 = vector.broadcast %cst_44 : f32 to vector<8x8xf32>
      %105 = arith.maximumf %103, %104 : vector<8x8xf32>
      %c0_45 = arith.constant 0 : index
      %c0_46 = arith.constant 0 : index
      %106 = vector.load %arg8[%c0_45, %c0_46] : memref<8x8xf32, #tpu.memory_space<vmem>>, vector<8x8xf32>
      tpu.vector_store %arg8[%c0_45, %c0_46], %105 {strides = array<i32>} : memref<8x8xf32, #tpu.memory_space<vmem>>, vector<8x8xf32>,
      %c0_47 = arith.constant 0 : index
      %c0_48 = arith.constant 0 : index
      %107 = vector.load %arg3[%c0_47, %c0_48] : memref<8x32xf32, #tpu.memory_space<vmem>>, vector<8x32xf32>
      %cst_49 = arith.constant dense<0.000000e+00> : vector<8x32xf32>
      %108 = tpu.matmul %105, %107, %cst_49 {dimension_numbers = #tpu.dot_dimension_numbers<[1], [0], [0], [1], [0, 0, 1, 1], [], []>} : vector<8x8xf32>, vector<8x32xf32>, vector<8x32xf32> -> vector<8x32xf32>
      %c0_50 = arith.constant 0 : index
      %c0_51 = arith.constant 0 : index
      %109 = vector.load %arg9[%c0_50, %c0_51] : memref<8x32xf32, #tpu.memory_space<vmem>>, vector<8x32xf32>
      tpu.vector_store %arg9[%c0_50, %c0_51], %108 {strides = array<i32>} : memref<8x32xf32, #tpu.memory_space<vmem>>, vector<8x32xf32>,
    } else {
    }
    return
  }
  func.func @transform_0(%arg0: i32, %arg1: i32) -> (i32, i32, i32) {
    %c0_i32 = arith.constant 0 : i32
    %c0_i32_0 = arith.constant 0 : i32
    return %arg0, %arg1, %c0_i32 : i32, i32, i32
  }
  func.func @transform_1(%arg0: i32, %arg1: i32) -> (i32, i32) {
    %c0_i32 = arith.constant 0 : i32
    %c0_i32_0 = arith.constant 0 : i32
    %c0_i32_1 = arith.constant 0 : i32
    return %c0_i32, %c0_i32_0 : i32, i32
  }
  func.func @transform_2(%arg0: i32, %arg1: i32) -> (i32, i32) {
    %c0_i32 = arith.constant 0 : i32
    %c0_i32_0 = arith.constant 0 : i32
    %c0_i32_1 = arith.constant 0 : i32
    return %c0_i32, %c0_i32_0 : i32, i32
  }
  func.func @transform_3(%arg0: i32, %arg1: i32) -> (i32, i32) {
    %c0_i32 = arith.constant 0 : i32
    %c0_i32_0 = arith.constant 0 : i32
    %c0_i32_1 = arith.constant 0 : i32
    return %c0_i32, %c0_i32_0 : i32, i32
  }
  func.func @transform_4(%arg0: i32, %arg1: i32) -> (i32, i32) {
    %c0_i32 = arith.constant 0 : i32
    %c0_i32_0 = arith.constant 0 : i32
    %c0_i32_1 = arith.constant 0 : i32
    return %c0_i32, %c0_i32_0 : i32, i32
  }
  func.func @transform_5(%arg0: i32, %arg1: i32) -> (i32, i32) {
    %c0_i32 = arith.constant 0 : i32
    %c0_i32_0 = arith.constant 0 : i32
    %c0_i32_1 = arith.constant 0 : i32
    return %c0_i32, %c0_i32_0 : i32, i32
  }
  func.func @transform_6(%arg0: i32, %arg1: i32) -> (i32, i32) {
    %c0_i32 = arith.constant 0 : i32
    %c0_i32_0 = arith.constant 0 : i32
    return %arg0, %c0_i32 : i32, i32
  }
  func.func @transform_7(%arg0: i32, %arg1: i32) -> (i32, i32) {
    %c0_i32 = arith.constant 0 : i32
    %c0_i32_0 = arith.constant 0 : i32
    return %arg0, %c0_i32 : i32, i32
  }
}

</mosaic_0001>

<llo_original>
// kernel: tpu_custom_call.1
$region0: #{tpu_custom_call.1}
  #allocation0 [shape = 'u32[]', space=smem, size = 0x4, offset = 0x4, fixed_abs, tag = 'smem constant byte address 0x4 - core index']
  #allocation1 [shape = 'u32[144,128]{1,0:T(1,128)}', space=vmem, size = 0x12000, scoped, tag = 'internal scratch']
  #allocation2 [shape = 'f32[8,32]{1,0:T(8,128)}', space=vmem, size = 0x1000, scoped, tag = 'scratch operand']
  %s0 = inlined_call_operand.hbm [shape: f32[16,16,32], index: 0, kind: input, shape index: {}]
  %s1 = inlined_call_operand.hbm [shape: f32[8,32], index: 1, kind: input, shape index: {}]
  %s2 = inlined_call_operand.hbm [shape: bf16[32,32], index: 2, kind: input, shape index: {}]
  %s3 = inlined_call_operand.vmem [shape: f32[1,32], index: 3, kind: input, shape index: {}]
  %s4 = inlined_call_operand.hbm [shape: bf16[32,32], index: 4, kind: input, shape index: {}]
  %s5 = inlined_call_operand.vmem [shape: f32[1,32], index: 5, kind: input, shape index: {}]
  %s6 = inlined_call_operand.vmem [shape: f32[16,8], index: 6, kind: output, shape index: {0}]
  %s7 = inlined_call_operand.hbm [shape: f32[16,32], index: 7, kind: output, shape index: {1}]
  %8 = xla_tuple %s6, %s7
  %s9 = sld [smem:[#allocation0]]
  $region97: #{tpu_custom_call.1} parent=0
    _
  %s11 = ssub.s32 1, %s9
  %s12 = scalar_select 0, %s11, %s9
  $region1: #{tpu_custom_call.1} parent=0
    #allocation3 [shape = 'u8[131072]{0}', space=vmem, size = 0x20000, scoped, tag = 'input window, operand 0']
    #allocation4 [shape = 's32[2]{0}', space=sflag, size = 0x8, scoped, tag = 'scoped memory for tpu_custom_call.1']
    #allocation5 [shape = 's32[2]{0}', space=sflag, size = 0x8, scoped, tag = 'scoped memory for tpu_custom_call.1']
    #allocation6 [shape = 'u8[4096]{0}', space=vmem, size = 0x1000, scoped, tag = 'input window, operand 1, single buffered']
    #allocation7 [shape = 's32[1]{0}', space=sflag, size = 0x4, scoped, tag = 'scoped memory for tpu_custom_call.1']
    #allocation8 [shape = 'u8[8192]{0}', space=vmem, size = 0x2000, scoped, tag = 'input window, operand 2, single buffered']
    #allocation9 [shape = 'u8[8192]{0}', space=vmem, size = 0x2000, scoped, tag = 'input window, operand 4, single buffered']
    #allocation10 [shape = 's32[1]{0}', space=sflag, size = 0x4, scoped, tag = 'scoped memory for tpu_custom_call.1']
    #allocation11 [shape = 'u8[8192]{0}', space=vmem, size = 0x2000, scoped, tag = 'output window, operand 1']
    %13 = vsyncpa [#allocation4], 0
    %s14 = scalar_lea.sflag [#allocation4], 1
    %15 = vsyncpa %s14, 0
    %16 = vsyncpa [#allocation7], 0
    %17 = vsyncpa [#allocation10], 0
    %18 = vsyncpa [#allocation5], 0
    %s19 = scalar_lea.sflag [#allocation5], 1
    %20 = vsyncpa %s19, 0
    loop: start=0, step=1, limit=4
    $region2: #{tpu_custom_call.1} parent=1 // loop_pre_header
      _
    $region3: #{tpu_custom_call.1} parent=1 // loop_header
      %s22 = sphi 0, %s26
      %p23 = scmp.ge.s32.totalorder %s22, 4
      %s29 = sphi 0, %s41
      %s30 = sphi 0, %s37
      %s31 = sphi 0, %s29
      %s32 = sphi 0, %s30
      %s33 = sphi 0, %s31
      %s34 = sphi 0, %s32
      %s46 = sphi 0, %s48
      %s49 = sphi 0, %s46
      %s50 = sphi 0, %s49
      %s66 = sphi 0, %s50
      %s70 = sphi 0, %s70
      %s72 = sphi 0, %s70
      %s73 = sphi 0, %s72
      %s87 = sphi 0, %s73
      %s91 = sphi 0, %s91
      %s93 = sphi 0, %s91
      %s94 = sphi 0, %s93
      %s108 = sphi 0, %s94
      %s112 = sphi 0, %s112
      %s114 = sphi 0, %s112
      %s115 = sphi 0, %s114
      %s129 = sphi 0, %s115
      %s133 = sphi 0, %s133
      %s135 = sphi 0, %s133
      %s136 = sphi 0, %s135
      %s150 = sphi 0, %s136
      %s154 = sphi 0, %s154
      %s156 = sphi 0, %s154
      %s157 = sphi 0, %s156
      %s171 = sphi 0, %s157
      %s177 = sphi 0, %s179
      %s180 = sphi 0, %s177
      %s181 = sphi 0, %s180
      %s197 = sphi 0, %s181
      %s203 = sphi 0, %s205
      %s206 = sphi 0, %s203
      %s207 = sphi 0, %s206
      %s223 = sphi 0, %s207
    $region4: #{tpu_custom_call.1} parent=1 // loop_header_branch
      %25 = sbr.rel (%p23) target = $region8
    $region5: #{tpu_custom_call.1} parent=1 // loop_body
      %s27 = ssub.s32 %s22, 1
      %s28 = ssub.s32 %s22, 2
      %s35 = sadd.s32 1, %s30
      %p36 = scmp.ge.s32.totalorder %s35, 1
      %s37 = scalar_select %p36, 0, %s35
      %s38 = sadd.s32 1, %s29
      %s39 = scalar_select %p36, %s38, %s29
      %p40 = scmp.ge.s32.totalorder %s39, 2
      %s41 = scalar_select %p40, 0, %s39
      %s42 = ssub.s32 %s29, %s41
      %s43 = ssub.s32 %s30, %s37
      %s44 = sor.u32 %s42, %s43
      %p45 = scmp.eq.s32.totalorder %s44, 0
      %s47 = sadd.s32 %s46, 1
      %s48 = scalar_select %p45, %s46, %s47
      %p51 = pneg %p45
      %p52 = scmp.eq.s32.totalorder %s22, 1
      %p53 = por %p51, %p52
      %p54 = scmp.ne.s32.totalorder %s46, %s49
      %p55 = scmp.eq.s32.totalorder %s22, 0
      %p56 = por %p54, %p55
      %p57 = scmp.ne.s32.totalorder %s46, %s49
      %p58 = scmp.eq.s32.totalorder %s27, 1
      %p59 = por %p57, %p58
      %p60 = scmp.ne.s32.totalorder %s49, %s50
      %p61 = scmp.eq.s32.totalorder %s27, 0
      %p62 = por %p60, %p61
      %p63 = scmp.ne.s32.totalorder %s49, %s50
      %p64 = scmp.eq.s32.totalorder %s28, 1
      %p65 = por %p63, %p64
      %p67 = scmp.ne.s32.totalorder %s50, %s66
      %p68 = scmp.eq.s32.totalorder %s28, 0
      %p69 = por %p67, %p68
      %s71 = sadd.s32 %s70, 1
      %p74 = scmp.eq.s32.totalorder %s22, 1
      %p75 = scmp.ne.s32.totalorder %s70, %s72
      %p76 = scmp.eq.s32.totalorder %s22, 0
      %p77 = por %p75, %p76
      %p78 = scmp.ne.s32.totalorder %s70, %s72
      %p79 = scmp.eq.s32.totalorder %s27, 1
      %p80 = por %p78, %p79
      %p81 = scmp.ne.s32.totalorder %s72, %s73
      %p82 = scmp.eq.s32.totalorder %s27, 0
      %p83 = por %p81, %p82
      %p84 = scmp.ne.s32.totalorder %s72, %s73
      %p85 = scmp.eq.s32.totalorder %s28, 1
      %p86 = por %p84, %p85
      %p88 = scmp.ne.s32.totalorder %s73, %s87
      %p89 = scmp.eq.s32.totalorder %s28, 0
      %p90 = por %p88, %p89
      %s92 = sadd.s32 %s91, 1
      %p95 = scmp.eq.s32.totalorder %s22, 1
      %p96 = scmp.ne.s32.totalorder %s91, %s93
      %p97 = scmp.eq.s32.totalorder %s22, 0
      %p98 = por %p96, %p97
      %p99 = scmp.ne.s32.totalorder %s91, %s93
      %p100 = scmp.eq.s32.totalorder %s27, 1
      %p101 = por %p99, %p100
      %p102 = scmp.ne.s32.totalorder %s93, %s94
      %p103 = scmp.eq.s32.totalorder %s27, 0
      %p104 = por %p102, %p103
      %p105 = scmp.ne.s32.totalorder %s93, %s94
      %p106 = scmp.eq.s32.totalorder %s28, 1
      %p107 = por %p105, %p106
      %p109 = scmp.ne.s32.totalorder %s94, %s108
      %p110 = scmp.eq.s32.totalorder %s28, 0
      %p111 = por %p109, %p110
      %s113 = sadd.s32 %s112, 1
      %p116 = scmp.eq.s32.totalorder %s22, 1
      %p117 = scmp.ne.s32.totalorder %s112, %s114
      %p118 = scmp.eq.s32.totalorder %s22, 0
      %p119 = por %p117, %p118
      %p120 = scmp.ne.s32.totalorder %s112, %s114
      %p121 = scmp.eq.s32.totalorder %s27, 1
      %p122 = por %p120, %p121
      %p123 = scmp.ne.s32.totalorder %s114, %s115
      %p124 = scmp.eq.s32.totalorder %s27, 0
      %p125 = por %p123, %p124
      %p126 = scmp.ne.s32.totalorder %s114, %s115
      %p127 = scmp.eq.s32.totalorder %s28, 1
      %p128 = por %p126, %p127
      %p130 = scmp.ne.s32.totalorder %s115, %s129
      %p131 = scmp.eq.s32.totalorder %s28, 0
      %p132 = por %p130, %p131
      %s134 = sadd.s32 %s133, 1
      %p137 = scmp.eq.s32.totalorder %s22, 1
      %p138 = scmp.ne.s32.totalorder %s133, %s135
      %p139 = scmp.eq.s32.totalorder %s22, 0
      %p140 = por %p138, %p139
      %p141 = scmp.ne.s32.totalorder %s133, %s135
      %p142 = scmp.eq.s32.totalorder %s27, 1
      %p143 = por %p141, %p142
      %p144 = scmp.ne.s32.totalorder %s135, %s136
      %p145 = scmp.eq.s32.totalorder %s27, 0
      %p146 = por %p144, %p145
      %p147 = scmp.ne.s32.totalorder %s135, %s136
      %p148 = scmp.eq.s32.totalorder %s28, 1
      %p149 = por %p147, %p148
      %p151 = scmp.ne.s32.totalorder %s136, %s150
      %p152 = scmp.eq.s32.totalorder %s28, 0
      %p153 = por %p151, %p152
      %s155 = sadd.s32 %s154, 1
      %p158 = scmp.eq.s32.totalorder %s22, 1
      %p159 = scmp.ne.s32.totalorder %s154, %s156
      %p160 = scmp.eq.s32.totalorder %s22, 0
      %p161 = por %p159, %p160
      %p162 = scmp.ne.s32.totalorder %s154, %s156
      %p163 = scmp.eq.s32.totalorder %s27, 1
      %p164 = por %p162, %p163
      %p165 = scmp.ne.s32.totalorder %s156, %s157
      %p166 = scmp.eq.s32.totalorder %s27, 0
      %p167 = por %p165, %p166
      %p168 = scmp.ne.s32.totalorder %s156, %s157
      %p169 = scmp.eq.s32.totalorder %s28, 1
      %p170 = por %p168, %p169
      %p172 = scmp.ne.s32.totalorder %s157, %s171
      %p173 = scmp.eq.s32.totalorder %s28, 0
      %p174 = por %p172, %p173
      %s175 = ssub.s32 %s29, %s41
      %p176 = scmp.eq.s32.totalorder %s175, 0
      %s178 = sadd.s32 %s177, 1
      %s179 = scalar_select %p176, %s177, %s178
      %p182 = pneg %p176
      %p183 = scmp.eq.s32.totalorder %s22, 1
      %p184 = por %p182, %p183
      %p185 = scmp.ne.s32.totalorder %s177, %s180
      %p186 = scmp.eq.s32.totalorder %s22, 0
      %p187 = por %p185, %p186
      %p188 = scmp.ne.s32.totalorder %s177, %s180
      %p189 = scmp.eq.s32.totalorder %s27, 1
      %p190 = por %p188, %p189
      %p191 = scmp.ne.s32.totalorder %s180, %s181
      %p192 = scmp.eq.s32.totalorder %s27, 0
      %p193 = por %p191, %p192
      %p194 = scmp.ne.s32.totalorder %s180, %s181
      %p195 = scmp.eq.s32.totalorder %s28, 1
      %p196 = por %p194, %p195
      %p198 = scmp.ne.s32.totalorder %s181, %s197
      %p199 = scmp.eq.s32.totalorder %s28, 0
      %p200 = por %p198, %p199
      %s201 = ssub.s32 %s29, %s41
      %p202 = scmp.eq.s32.totalorder %s201, 0
      %s204 = sadd.s32 %s203, 1
      %s205 = scalar_select %p202, %s203, %s204
      %p208 = pneg %p202
      %p209 = scmp.eq.s32.totalorder %s22, 1
      %p210 = por %p208, %p209
      %p211 = scmp.ne.s32.totalorder %s203, %s206
      %p212 = scmp.eq.s32.totalorder %s22, 0
      %p213 = por %p211, %p212
      %p214 = scmp.ne.s32.totalorder %s203, %s206
      %p215 = scmp.eq.s32.totalorder %s27, 1
      %p216 = por %p214, %p215
      %p217 = scmp.ne.s32.totalorder %s206, %s207
      %p218 = scmp.eq.s32.totalorder %s27, 0
      %p219 = por %p217, %p218
      %p220 = scmp.ne.s32.totalorder %s206, %s207
      %p221 = scmp.eq.s32.totalorder %s28, 1
      %p222 = por %p220, %p221
      %p224 = scmp.ne.s32.totalorder %s207, %s223
      %p225 = scmp.eq.s32.totalorder %s28, 0
      %p226 = por %p224, %p225
      %p227 = scmp.le.s32.totalorder 1, %s22
      %p228 = scmp.lt.s32.totalorder %s22, 3
      %p229 = pnand %p227, %p228
      %p230 = pneg %p229
      // Predicated region
      $region9: #{tpu_custom_call.1} parent=5 // pred_check
        _
      $region10: #{tpu_custom_call.1} parent=5 // pred_check_branch
        %232 = sbr.rel (%p229) target = $region12
      $region11: #{tpu_custom_call.1} parent=5 // pred_region
        %s233 = ssub.s32 %s22, 1
        // Predicated region
        $region13: #{tpu_custom_call.1} parent=11 // pred_check
          %p234 = pneg %p83
        $region14: #{tpu_custom_call.1} parent=11 // pred_check_branch
          %236 = sbr.rel (%p234) target = $region16
        $region15: #{tpu_custom_call.1} parent=11 // pred_region
          %s238 = ssub.s32 128, 128
          %239 = vsyncadd [#allocation7], %s238
          %s241 = sshll.u32 [#allocation6], 4
          %s242 = int_to_ptr.vmem [resolvable:$true] %s241
          %244 = dma.hbm_to_vmem [thread:$0]  %s1, 128, %s242, [#allocation7]
        $region16: #{tpu_custom_call.1} parent=11 // pred_fallthru
          _
        // Predicated region
        $region17: #{tpu_custom_call.1} parent=11 // pred_check
          %p245 = pneg %p104
        $region18: #{tpu_custom_call.1} parent=11 // pred_check_branch
          %247 = sbr.rel (%p245) target = $region20
        $region19: #{tpu_custom_call.1} parent=11 // pred_region
          %s249 = ssub.s32 256, 256
          %250 = vsyncadd [#allocation7], %s249
          %s251 = sshll.u32 [#allocation8], 4
          %s252 = int_to_ptr.vmem [resolvable:$true] %s251
          %257 = dma.hbm_to_vmem [thread:$0]  %s2, 256, %s252, [#allocation7], 64, 64, 4
        $region20: #{tpu_custom_call.1} parent=11 // pred_fallthru
          _
        // Predicated region
        $region21: #{tpu_custom_call.1} parent=11 // pred_check
          %p258 = pneg %p125
        $region22: #{tpu_custom_call.1} parent=11 // pred_check_branch
          %260 = sbr.rel (%p258) target = $region24
        $region23: #{tpu_custom_call.1} parent=11 // pred_region
          _
        $region24: #{tpu_custom_call.1} parent=11 // pred_fallthru
          _
        // Predicated region
        $region25: #{tpu_custom_call.1} parent=11 // pred_check
          %p261 = pneg %p146
        $region26: #{tpu_custom_call.1} parent=11 // pred_check_branch
          %263 = sbr.rel (%p261) target = $region28
        $region27: #{tpu_custom_call.1} parent=11 // pred_region
          %s265 = ssub.s32 256, 256
          %266 = vsyncadd [#allocation10], %s265
          %s267 = sshll.u32 [#allocation9], 4
          %s268 = int_to_ptr.vmem [resolvable:$true] %s267
          %273 = dma.hbm_to_vmem [thread:$0]  %s4, 256, %s268, [#allocation10], 64, 64, 4
        $region28: #{tpu_custom_call.1} parent=11 // pred_fallthru
          _
        // Predicated region
        $region29: #{tpu_custom_call.1} parent=11 // pred_check
          %p274 = pneg %p167
        $region30: #{tpu_custom_call.1} parent=11 // pred_check_branch
          %276 = sbr.rel (%p274) target = $region32
        $region31: #{tpu_custom_call.1} parent=11 // pred_region
          _
        $region32: #{tpu_custom_call.1} parent=11 // pred_fallthru
          _
      $region12: #{tpu_custom_call.1} parent=5 // pred_fallthru
        _
      %p277 = scmp.lt.s32.totalorder %s22, 2
      // Predicated region
      $region33: #{tpu_custom_call.1} parent=5 // pred_check
        %p278 = pneg %p277
      $region34: #{tpu_custom_call.1} parent=5 // pred_check_branch
        %280 = sbr.rel (%p278) target = $region36
      $region35: #{tpu_custom_call.1} parent=5 // pred_region
        // Predicated region
        $region37: #{tpu_custom_call.1} parent=35 // pred_check
          %p281 = pneg %p56
        $region38: #{tpu_custom_call.1} parent=35 // pred_check_branch
          %283 = sbr.rel (%p281) target = $region40
        $region39: #{tpu_custom_call.1} parent=35 // pred_region
          %s284 = sand.u32 %s46, 1
          %s285 = scalar_lea.sflag [#allocation4], %s284
          %s286 = sand.u32 %s46, 1
          %s287 = smul.addr %s286, 128
          %s288 = scalar_lea.vmem [#allocation3], %s287
          %s289 = smul.u32 8, %s29
          %s290 = smul.u32 2, %s30
          %s292 = ssub.s32 2048, 2048
          %293 = vsyncadd %s285, %s292
          %s294 = smul.addr %s289, 2
          %s295 = sadd.s32 %s290, %s294
          %s296 = smul.addr %s295, 128
          %s297 = scalar_lea.hbm %s0, %s296
          %s298 = sshll.u32 %s288, 4
          %s299 = int_to_ptr.vmem [resolvable:$true] %s298
          %304 = dma.hbm_to_vmem [thread:$0]  %s297, 2048, %s299, %s285, 128, 128, 8
        $region40: #{tpu_custom_call.1} parent=35 // pred_fallthru
          _
      $region36: #{tpu_custom_call.1} parent=5 // pred_fallthru
        _
      %p305 = scmp.le.s32.totalorder 1, %s22
      %p306 = scmp.lt.s32.totalorder %s22, 3
      %p307 = pnand %p305, %p306
      %p308 = pneg %p307
      // Predicated region
      $region41: #{tpu_custom_call.1} parent=5 // pred_check
        _
      $region42: #{tpu_custom_call.1} parent=5 // pred_check_branch
        %310 = sbr.rel (%p307) target = $region44
      $region43: #{tpu_custom_call.1} parent=5 // pred_region
        %s311 = ssub.s32 %s22, 1
        %s312 = sand.u32 %s49, 1
        %s313 = scalar_lea.sflag [#allocation4], %s312
        %s314 = sand.u32 %s49, 1
        %s315 = smul.addr %s314, 128
        %s316 = scalar_lea.vmem [#allocation3], %s315
        // Predicated region
        $region45: #{tpu_custom_call.1} parent=43 // pred_check
          %p317 = pneg %p62
        $region46: #{tpu_custom_call.1} parent=43 // pred_check_branch
          %319 = sbr.rel (%p317) target = $region48
        $region47: #{tpu_custom_call.1} parent=43 // pred_region
          %320 = dma.done %s313, 2048
        $region48: #{tpu_custom_call.1} parent=43 // pred_fallthru
          _
        // Predicated region
        $region49: #{tpu_custom_call.1} parent=43 // pred_check
          %p321 = pneg %p83
        $region50: #{tpu_custom_call.1} parent=43 // pred_check_branch
          %323 = sbr.rel (%p321) target = $region52
        $region51: #{tpu_custom_call.1} parent=43 // pred_region
          %324 = dma.done [#allocation7], 128
        $region52: #{tpu_custom_call.1} parent=43 // pred_fallthru
          _
        // Predicated region
        $region53: #{tpu_custom_call.1} parent=43 // pred_check
          %p325 = pneg %p104
        $region54: #{tpu_custom_call.1} parent=43 // pred_check_branch
          %327 = sbr.rel (%p325) target = $region56
        $region55: #{tpu_custom_call.1} parent=43 // pred_region
          %328 = dma.done [#allocation7], 256
        $region56: #{tpu_custom_call.1} parent=43 // pred_fallthru
          _
        // Predicated region
        $region57: #{tpu_custom_call.1} parent=43 // pred_check
          %p329 = pneg %p146
        $region58: #{tpu_custom_call.1} parent=43 // pred_check_branch
          %331 = sbr.rel (%p329) target = $region60
        $region59: #{tpu_custom_call.1} parent=43 // pred_region
          %332 = dma.done [#allocation10], 256
        $region60: #{tpu_custom_call.1} parent=43 // pred_fallthru
          _
        %s333 = sand.u32 %s49, 1
        %s334 = scalar_lea.sflag [#allocation4], %s333
        %s335 = sand.u32 %s49, 1
        %s336 = smul.addr %s335, 128
        %s337 = scalar_lea.vmem [#allocation3], %s336
        %p338 = pneg %p62
        %p339 = pneg %p59
        %p340 = pneg %p83
        %p341 = pneg %p80
        %p342 = pneg %p104
        %p343 = pneg %p101
        %p344 = pneg %p125
        %p345 = pneg %p122
        %p346 = pneg %p146
        %p347 = pneg %p143
        %p348 = pneg %p167
        %p349 = pneg %p164
        %p350 = pneg %p193
        %p351 = pneg %p190
        %p352 = scmp.lt.s32.totalorder %s31, 1
        %s353 = scalar_select %p352, %s31, 1
        %s354 = smul.addr %s353, 8
        %s355 = scalar_lea.vmem %s6, %s354
        %p356 = pneg %p219
        %p357 = pneg %p216
        %s358 = sand.u32 %s206, 1
        %s359 = scalar_lea.sflag [#allocation5], %s358
        %s360 = sand.u32 %s206, 1
        %s361 = smul.addr %s360, 8
        %s362 = scalar_lea.vmem [#allocation11], %s361
        %s363 = smul.u32 8, %s31
        %s364 = smul.u32 2, %s32
        %p365 = scmp.lt.s32.totalorder %s31, 1
        %s366 = scalar_select %p365, %s31, 1
        %s367 = smul.addr %s366, 8
        %s368 = scalar_lea.vmem %s6, %s367
        %p370 = scmp.eq.s32.totalorder %s32, 0
        // Predicated region
        $region61: #{tpu_custom_call.1} parent=43 // pred_check
          %p371 = pneg %p370
        $region62: #{tpu_custom_call.1} parent=43 // pred_check_branch
          %373 = sbr.rel (%p371) target = $region64
        $region63: #{tpu_custom_call.1} parent=43 // pred_region
          %vm374 = vcmask 261120
          %375 = vst.msk [vmem:[#allocation2] sm:$0xff] %vm374, 0.0
        $region64: #{tpu_custom_call.1} parent=43 // pred_fallthru
          _
        %v376 = vld [vmem:[%s316] sm:$0xff]
        %v377 = vld [vmem:[%s316 + $0x8] sm:$0xff]
        %v378 = vld [vmem:[%s316 + $0x10] sm:$0xff]
        %v379 = vld [vmem:[%s316 + $0x18] sm:$0xff]
        %v380 = vld [vmem:[%s316 + $0x20] sm:$0xff]
        %v381 = vld [vmem:[%s316 + $0x28] sm:$0xff]
        %v382 = vld [vmem:[%s316 + $0x30] sm:$0xff]
        %v383 = vld [vmem:[%s316 + $0x38] sm:$0xff]
        %v384 = vld [vmem:[%s316 + $0x40] sm:$0xff]
        %v385 = vld [vmem:[%s316 + $0x48] sm:$0xff]
        %v386 = vld [vmem:[%s316 + $0x50] sm:$0xff]
        %v387 = vld [vmem:[%s316 + $0x58] sm:$0xff]
        %v388 = vld [vmem:[%s316 + $0x60] sm:$0xff]
        %v389 = vld [vmem:[%s316 + $0x68] sm:$0xff]
        %v390 = vld [vmem:[%s316 + $0x70] sm:$0xff]
        %v391 = vld [vmem:[%s316 + $0x78] sm:$0xff]
        %vm392 = vcmask 261120
        %v393 = vsel %vm392, %v376, 0.0
        %394 = vadd.xlane.f32.xlu0 %v393
        %v395 = vpop.xlane.xlu0 %394
        %v396 = vsel %vm392, %v377, 0.0
        %397 = vadd.xlane.f32.xlu0 %v396
        %v398 = vpop.xlane.xlu0 %397
        %v399 = vsel %vm392, %v378, 0.0
        %400 = vadd.xlane.f32.xlu0 %v399
        %v401 = vpop.xlane.xlu0 %400
        %v402 = vsel %vm392, %v379, 0.0
        %403 = vadd.xlane.f32.xlu0 %v402
        %v404 = vpop.xlane.xlu0 %403
        %v405 = vsel %vm392, %v380, 0.0
        %406 = vadd.xlane.f32.xlu0 %v405
        %v407 = vpop.xlane.xlu0 %406
        %v408 = vsel %vm392, %v381, 0.0
        %409 = vadd.xlane.f32.xlu0 %v408
        %v410 = vpop.xlane.xlu0 %409
        %v411 = vsel %vm392, %v382, 0.0
        %412 = vadd.xlane.f32.xlu0 %v411
        %v413 = vpop.xlane.xlu0 %412
        %v414 = vsel %vm392, %v383, 0.0
        %415 = vadd.xlane.f32.xlu0 %v414
        %v416 = vpop.xlane.xlu0 %415
        %v417 = vsel %vm392, %v384, 0.0
        %418 = vadd.xlane.f32.xlu0 %v417
        %v419 = vpop.xlane.xlu0 %418
        %v420 = vsel %vm392, %v385, 0.0
        %421 = vadd.xlane.f32.xlu0 %v420
        %v422 = vpop.xlane.xlu0 %421
        %v423 = vsel %vm392, %v386, 0.0
        %424 = vadd.xlane.f32.xlu0 %v423
        %v425 = vpop.xlane.xlu0 %424
        %v426 = vsel %vm392, %v387, 0.0
        %427 = vadd.xlane.f32.xlu0 %v426
        %v428 = vpop.xlane.xlu0 %427
        %v429 = vsel %vm392, %v388, 0.0
        %430 = vadd.xlane.f32.xlu0 %v429
        %v431 = vpop.xlane.xlu0 %430
        %v432 = vsel %vm392, %v389, 0.0
        %433 = vadd.xlane.f32.xlu0 %v432
        %v434 = vpop.xlane.xlu0 %433
        %v435 = vsel %vm392, %v390, 0.0
        %436 = vadd.xlane.f32.xlu0 %v435
        %v437 = vpop.xlane.xlu0 %436
        %v438 = vsel %vm392, %v391, 0.0
        %439 = vadd.xlane.f32.xlu0 %v438
        %v440 = vpop.xlane.xlu0 %439
        %v441 = vrcp.pop 32.0
        %v442 = vmul.f32 %v395, %v441
        %v443 = vmul.f32 %v398, %v441
        %v444 = vmul.f32 %v401, %v441
        %v445 = vmul.f32 %v404, %v441
        %v446 = vmul.f32 %v407, %v441
        %v447 = vmul.f32 %v410, %v441
        %v448 = vmul.f32 %v413, %v441
        %v449 = vmul.f32 %v416, %v441
        %v450 = vmul.f32 %v419, %v441
        %v451 = vmul.f32 %v422, %v441
        %v452 = vmul.f32 %v425, %v441
        %v453 = vmul.f32 %v428, %v441
        %v454 = vmul.f32 %v431, %v441
        %v455 = vmul.f32 %v434, %v441
        %v456 = vmul.f32 %v437, %v441
        %v457 = vmul.f32 %v440, %v441
        %v458 = vsub.f32 %v376, %v442
        %v459 = vsub.f32 %v377, %v443
        %v460 = vsub.f32 %v378, %v444
        %v461 = vsub.f32 %v379, %v445
        %v462 = vsub.f32 %v380, %v446
        %v463 = vsub.f32 %v381, %v447
        %v464 = vsub.f32 %v382, %v448
        %v465 = vsub.f32 %v383, %v449
        %v466 = vsub.f32 %v384, %v450
        %v467 = vsub.f32 %v385, %v451
        %v468 = vsub.f32 %v386, %v452
        %v469 = vsub.f32 %v387, %v453
        %v470 = vsub.f32 %v388, %v454
        %v471 = vsub.f32 %v389, %v455
        %v472 = vsub.f32 %v390, %v456
        %v473 = vsub.f32 %v391, %v457
        %v474 = vmul.f32 %v458, %v458
        %v475 = vmul.f32 %v459, %v459
        %v476 = vmul.f32 %v460, %v460
        %v477 = vmul.f32 %v461, %v461
        %v478 = vmul.f32 %v462, %v462
        %v479 = vmul.f32 %v463, %v463
        %v480 = vmul.f32 %v464, %v464
        %v481 = vmul.f32 %v465, %v465
        %v482 = vmul.f32 %v466, %v466
        %v483 = vmul.f32 %v467, %v467
        %v484 = vmul.f32 %v468, %v468
        %v485 = vmul.f32 %v469, %v469
        %v486 = vmul.f32 %v470, %v470
        %v487 = vmul.f32 %v471, %v471
        %v488 = vmul.f32 %v472, %v472
        %v489 = vmul.f32 %v473, %v473
        %v490 = vsel %vm392, %v474, 0.0
        %491 = vadd.xlane.f32.xlu0 %v490
        %v492 = vpop.xlane.xlu0 %491
        %v493 = vsel %vm392, %v475, 0.0
        %494 = vadd.xlane.f32.xlu0 %v493
        %v495 = vpop.xlane.xlu0 %494
        %v496 = vsel %vm392, %v476, 0.0
        %497 = vadd.xlane.f32.xlu0 %v496
        %v498 = vpop.xlane.xlu0 %497
        %v499 = vsel %vm392, %v477, 0.0
        %500 = vadd.xlane.f32.xlu0 %v499
        %v501 = vpop.xlane.xlu0 %500
        %v502 = vsel %vm392, %v478, 0.0
        %503 = vadd.xlane.f32.xlu0 %v502
        %v504 = vpop.xlane.xlu0 %503
        %v505 = vsel %vm392, %v479, 0.0
        %506 = vadd.xlane.f32.xlu0 %v505
        %v507 = vpop.xlane.xlu0 %506
        %v508 = vsel %vm392, %v480, 0.0
        %509 = vadd.xlane.f32.xlu0 %v508
        %v510 = vpop.xlane.xlu0 %509
        %v511 = vsel %vm392, %v481, 0.0
        %512 = vadd.xlane.f32.xlu0 %v511
        %v513 = vpop.xlane.xlu0 %512
        %v514 = vsel %vm392, %v482, 0.0
        %515 = vadd.xlane.f32.xlu0 %v514
        %v516 = vpop.xlane.xlu0 %515
        %v517 = vsel %vm392, %v483, 0.0
        %518 = vadd.xlane.f32.xlu0 %v517
        %v519 = vpop.xlane.xlu0 %518
        %v520 = vsel %vm392, %v484, 0.0
        %521 = vadd.xlane.f32.xlu0 %v520
        %v522 = vpop.xlane.xlu0 %521
        %v523 = vsel %vm392, %v485, 0.0
        %524 = vadd.xlane.f32.xlu0 %v523
        %v525 = vpop.xlane.xlu0 %524
        %v526 = vsel %vm392, %v486, 0.0
        %527 = vadd.xlane.f32.xlu0 %v526
        %v528 = vpop.xlane.xlu0 %527
        %v529 = vsel %vm392, %v487, 0.0
        %530 = vadd.xlane.f32.xlu0 %v529
        %v531 = vpop.xlane.xlu0 %530
        %v532 = vsel %vm392, %v488, 0.0
        %533 = vadd.xlane.f32.xlu0 %v532
        %v534 = vpop.xlane.xlu0 %533
        %v535 = vsel %vm392, %v489, 0.0
        %536 = vadd.xlane.f32.xlu0 %v535
        %v537 = vpop.xlane.xlu0 %536
        %v538 = vmul.f32 %v492, %v441
        %v539 = vmul.f32 %v495, %v441
        %v540 = vmul.f32 %v498, %v441
        %v541 = vmul.f32 %v501, %v441
        %v542 = vmul.f32 %v504, %v441
        %v543 = vmul.f32 %v507, %v441
        %v544 = vmul.f32 %v510, %v441
        %v545 = vmul.f32 %v513, %v441
        %v546 = vmul.f32 %v516, %v441
        %v547 = vmul.f32 %v519, %v441
        %v548 = vmul.f32 %v522, %v441
        %v549 = vmul.f32 %v525, %v441
        %v550 = vmul.f32 %v528, %v441
        %v551 = vmul.f32 %v531, %v441
        %v552 = vmul.f32 %v534, %v441
        %v553 = vmul.f32 %v537, %v441
        %v554 = vadd.f32 %v538, 1e-05
        %v555 = vadd.f32 %v539, 1e-05
        %v556 = vadd.f32 %v540, 1e-05
        %v557 = vadd.f32 %v541, 1e-05
        %v558 = vadd.f32 %v542, 1e-05
        %v559 = vadd.f32 %v543, 1e-05
        %v560 = vadd.f32 %v544, 1e-05
        %v561 = vadd.f32 %v545, 1e-05
        %v562 = vadd.f32 %v546, 1e-05
        %v563 = vadd.f32 %v547, 1e-05
        %v564 = vadd.f32 %v548, 1e-05
        %v565 = vadd.f32 %v549, 1e-05
        %v566 = vadd.f32 %v550, 1e-05
        %v567 = vadd.f32 %v551, 1e-05
        %v568 = vadd.f32 %v552, 1e-05
        %v569 = vadd.f32 %v553, 1e-05
        %v570 = vrsqrt.pop %v554
        %v571 = vrsqrt.pop %v555
        %v572 = vrsqrt.pop %v556
        %v573 = vrsqrt.pop %v557
        %v574 = vrsqrt.pop %v558
        %v575 = vrsqrt.pop %v559
        %v576 = vrsqrt.pop %v560
        %v577 = vrsqrt.pop %v561
        %v578 = vrsqrt.pop %v562
        %v579 = vrsqrt.pop %v563
        %v580 = vrsqrt.pop %v564
        %v581 = vrsqrt.pop %v565
        %v582 = vrsqrt.pop %v566
        %v583 = vrsqrt.pop %v567
        %v584 = vrsqrt.pop %v568
        %v585 = vrsqrt.pop %v569
        %v586 = vmul.f32 %v458, %v570
        %v587 = vmul.f32 %v459, %v571
        %v588 = vmul.f32 %v460, %v572
        %v589 = vmul.f32 %v461, %v573
        %v590 = vmul.f32 %v462, %v574
        %v591 = vmul.f32 %v463, %v575
        %v592 = vmul.f32 %v464, %v576
        %v593 = vmul.f32 %v465, %v577
        %v594 = vmul.f32 %v466, %v578
        %v595 = vmul.f32 %v467, %v579
        %v596 = vmul.f32 %v468, %v580
        %v597 = vmul.f32 %v469, %v581
        %v598 = vmul.f32 %v470, %v582
        %v599 = vmul.f32 %v471, %v583
        %v600 = vmul.f32 %v472, %v584
        %v601 = vmul.f32 %v473, %v585
        %v602 = vpack.c.bf16 %v587, %v586
        %v603 = vpack.c.bf16 %v589, %v588
        %v604 = vpack.c.bf16 %v591, %v590
        %v605 = vpack.c.bf16 %v593, %v592
        %v606 = vpack.c.bf16 %v595, %v594
        %v607 = vpack.c.bf16 %v597, %v596
        %v608 = vpack.c.bf16 %v599, %v598
        %v609 = vpack.c.bf16 %v601, %v600
        %v610 = vld [vmem:[#allocation8] sm:$0xf]
        %v611 = vld [vmem:[#allocation8 + $0x4] sm:$0xf]
        %v612 = vld [vmem:[#allocation8 + $0x8] sm:$0xf]
        %v613 = vld [vmem:[#allocation8 + $0xc] sm:$0xf]
        %v614 = vld [vmem:[%s3] sm:$0x1]
        %v616 = vlaneseq
        %v617 = vshrl.u32 %v616, 7
        %v618 = vsub.s32 0, %v617
        %v619 = vrot.slane %v614, %v618
        %v625 = vunpack.c.l.b16 %v610
        %v626 = vunpack.c.l.b16 %v611
        %v627 = vunpack.c.l.b16 %v612
        %v628 = vunpack.c.l.b16 %v613
        %v629 = vpack.c.b16 %v626, %v625
        %v630 = vpack.c.b16 %v628, %v627
        %v634 = vsel %vm392, %v602, 0
        %v637 = vsel %vm392, %v603, 0
        %v640 = vsel %vm392, %v604, 0
        %v643 = vsel %vm392, %v605, 0
        %v646 = vsel %vm392, %v606, 0
        %v649 = vsel %vm392, %v607, 0
        %v652 = vsel %vm392, %v608, 0
        %v655 = vsel %vm392, %v609, 0
        %657 = vmatprep.subr.bf16.mxu0 0
        %658 = vmatpush1.bf16.msra.mxu0 %v629
        %659 = vmatprep.subr.bf16.mxu0 0
        %660 = vmatpush1.bf16.msra.mxu0 %v630
        %661 = vmatprep.subr.bf16.mxu0 0
        %662 = vmatpush1.bf16.msra.mxu0 0
        %663 = vmatprep.subr.bf16.mxu0 0
        %664 = vmatpush1.bf16.msra.mxu0 0
        %665 = vmatprep.subr.bf16.mxu0 0
        %666 = vmatpush1.bf16.msra.mxu0 0
        %667 = vmatprep.subr.bf16.mxu0 0
        %668 = vmatpush1.bf16.msra.mxu0 0
        %669 = vmatprep.subr.bf16.mxu0 0
        %670 = vmatpush1.bf16.msra.mxu0 0
        %671 = vmatprep.subr.bf16.mxu0 0
        %672 = vmatpush1.bf16.msra.mxu0 0
        %673 = vmatprep.subr.bf16.mxu0 0
        %674 = vmatpush1.bf16.msra.mxu0 0
        %675 = vmatprep.subr.bf16.mxu0 0
        %676 = vmatpush1.bf16.msra.mxu0 0
        %677 = vmatprep.subr.bf16.mxu0 0
        %678 = vmatpush1.bf16.msra.mxu0 0
        %679 = vmatprep.subr.bf16.mxu0 0
        %680 = vmatpush1.bf16.msra.mxu0 0
        %681 = vmatprep.subr.bf16.mxu0 0
        %682 = vmatpush1.bf16.msra.mxu0 0
        %683 = vmatprep.subr.bf16.mxu0 0
        %684 = vmatpush1.bf16.msra.mxu0 0
        %685 = vmatprep.subr.bf16.mxu0 0
        %686 = vmatpush1.bf16.msra.mxu0 0
        %687 = vmatprep.subr.bf16.mxu0 0
        %688 = vmatpush1.bf16.msra.mxu0 0
        %689 = vmatprep.mubr.bf16.mxu0 0
        %690 = vmatmul.mubr.bf16.gmra.mrb[0].mxu0 %v634
        %v691 = vpop.f32.mrb[0].mxu0
        %v692 = vadd.f32 %v619, %v691
        %v693 = vpop.f32.mrb[0].mxu0
        %v694 = vpop.f32.mrb[0].mxu0
        %v695 = vadd.f32 %v619, %v694
        %v696 = vpop.f32.mrb[0].mxu0
        %697 = vmatprep.mubr.bf16.mxu0 0
        %698 = vmatmul.mubr.bf16.gmra.mrb[0].mxu0 %v637
        %v699 = vpop.f32.mrb[0].mxu0
        %v700 = vadd.f32 %v619, %v699
        %v701 = vpop.f32.mrb[0].mxu0
        %v702 = vpop.f32.mrb[0].mxu0
        %v703 = vadd.f32 %v619, %v702
        %v704 = vpop.f32.mrb[0].mxu0
        %705 = vmatprep.mubr.bf16.mxu0 0
        %706 = vmatmul.mubr.bf16.gmra.mrb[0].mxu0 %v640
        %v707 = vpop.f32.mrb[0].mxu0
        %v708 = vadd.f32 %v619, %v707
        %v709 = vpop.f32.mrb[0].mxu0
        %v710 = vpop.f32.mrb[0].mxu0
        %v711 = vadd.f32 %v619, %v710
        %v712 = vpop.f32.mrb[0].mxu0
        %713 = vmatprep.mubr.bf16.mxu0 0
        %714 = vmatmul.mubr.bf16.gmra.mrb[0].mxu0 %v643
        %v715 = vpop.f32.mrb[0].mxu0
        %v716 = vadd.f32 %v619, %v715
        %v717 = vpop.f32.mrb[0].mxu0
        %v718 = vpop.f32.mrb[0].mxu0
        %v719 = vadd.f32 %v619, %v718
        %v720 = vpop.f32.mrb[0].mxu0
        %721 = vmatprep.mubr.bf16.mxu0 0
        %722 = vmatmul.mubr.bf16.gmra.mrb[0].mxu0 %v646
        %v723 = vpop.f32.mrb[0].mxu0
        %v724 = vadd.f32 %v619, %v723
        %v725 = vpop.f32.mrb[0].mxu0
        %v726 = vpop.f32.mrb[0].mxu0
        %v727 = vadd.f32 %v619, %v726
        %v728 = vpop.f32.mrb[0].mxu0
        %729 = vmatprep.mubr.bf16.mxu0 0
        %730 = vmatmul.mubr.bf16.gmra.mrb[0].mxu0 %v649
        %v731 = vpop.f32.mrb[0].mxu0
        %v732 = vadd.f32 %v619, %v731
        %v733 = vpop.f32.mrb[0].mxu0
        %v734 = vpop.f32.mrb[0].mxu0
        %v735 = vadd.f32 %v619, %v734
        %v736 = vpop.f32.mrb[0].mxu0
        %737 = vmatprep.mubr.bf16.mxu0 0
        %738 = vmatmul.mubr.bf16.gmra.mrb[0].mxu0 %v652
        %v739 = vpop.f32.mrb[0].mxu0
        %v740 = vadd.f32 %v619, %v739
        %v741 = vpop.f32.mrb[0].mxu0
        %v742 = vpop.f32.mrb[0].mxu0
        %v743 = vadd.f32 %v619, %v742
        %v744 = vpop.f32.mrb[0].mxu0
        %745 = vmatprep.mubr.bf16.mxu0 0
        %746 = vmatmul.mubr.bf16.gmra.mrb[0].mxu0 %v655
        %v747 = vpop.f32.mrb[0].mxu0
        %v748 = vadd.f32 %v619, %v747
        %v749 = vpop.f32.mrb[0].mxu0
        %v750 = vpop.f32.mrb[0].mxu0
        %v751 = vadd.f32 %v619, %v750
        %v752 = vpop.f32.mrb[0].mxu0
        %753 = vdwg.mxu0
        %v754 = vmul.f32 %v692, 0.5
        %v755 = vmul.f32 %v695, 0.5
        %v756 = vmul.f32 %v700, 0.5
        %v757 = vmul.f32 %v703, 0.5
        %v758 = vmul.f32 %v708, 0.5
        %v759 = vmul.f32 %v711, 0.5
        %v760 = vmul.f32 %v716, 0.5
        %v761 = vmul.f32 %v719, 0.5
        %v762 = vmul.f32 %v724, 0.5
        %v763 = vmul.f32 %v727, 0.5
        %v764 = vmul.f32 %v732, 0.5
        %v765 = vmul.f32 %v735, 0.5
        %v766 = vmul.f32 %v740, 0.5
        %v767 = vmul.f32 %v743, 0.5
        %v768 = vmul.f32 %v748, 0.5
        %v769 = vmul.f32 %v751, 0.5
        %v770 = vmul.f32 %v692, 0.044715
        %v771 = vmul.f32 %v695, 0.044715
        %v772 = vmul.f32 %v700, 0.044715
        %v773 = vmul.f32 %v703, 0.044715
        %v774 = vmul.f32 %v708, 0.044715
        %v775 = vmul.f32 %v711, 0.044715
        %v776 = vmul.f32 %v716, 0.044715
        %v777 = vmul.f32 %v719, 0.044715
        %v778 = vmul.f32 %v724, 0.044715
        %v779 = vmul.f32 %v727, 0.044715
        %v780 = vmul.f32 %v732, 0.044715
        %v781 = vmul.f32 %v735, 0.044715
        %v782 = vmul.f32 %v740, 0.044715
        %v783 = vmul.f32 %v743, 0.044715
        %v784 = vmul.f32 %v748, 0.044715
        %v785 = vmul.f32 %v751, 0.044715
        %v786 = vmul.f32 %v770, %v692
        %v787 = vmul.f32 %v771, %v695
        %v788 = vmul.f32 %v772, %v700
        %v789 = vmul.f32 %v773, %v703
        %v790 = vmul.f32 %v774, %v708
        %v791 = vmul.f32 %v775, %v711
        %v792 = vmul.f32 %v776, %v716
        %v793 = vmul.f32 %v777, %v719
        %v794 = vmul.f32 %v778, %v724
        %v795 = vmul.f32 %v779, %v727
        %v796 = vmul.f32 %v780, %v732
        %v797 = vmul.f32 %v781, %v735
        %v798 = vmul.f32 %v782, %v740
        %v799 = vmul.f32 %v783, %v743
        %v800 = vmul.f32 %v784, %v748
        %v801 = vmul.f32 %v785, %v751
        %v802 = vmul.f32 %v786, %v692
        %v803 = vmul.f32 %v787, %v695
        %v804 = vmul.f32 %v788, %v700
        %v805 = vmul.f32 %v789, %v703
        %v806 = vmul.f32 %v790, %v708
        %v807 = vmul.f32 %v791, %v711
        %v808 = vmul.f32 %v792, %v716
        %v809 = vmul.f32 %v793, %v719
        %v810 = vmul.f32 %v794, %v724
        %v811 = vmul.f32 %v795, %v727
        %v812 = vmul.f32 %v796, %v732
        %v813 = vmul.f32 %v797, %v735
        %v814 = vmul.f32 %v798, %v740
        %v815 = vmul.f32 %v799, %v743
        %v816 = vmul.f32 %v800, %v748
        %v817 = vmul.f32 %v801, %v751
        %v818 = vadd.f32 %v692, %v802
        %v819 = vadd.f32 %v695, %v803
        %v820 = vadd.f32 %v700, %v804
        %v821 = vadd.f32 %v703, %v805
        %v822 = vadd.f32 %v708, %v806
        %v823 = vadd.f32 %v711, %v807
        %v824 = vadd.f32 %v716, %v808
        %v825 = vadd.f32 %v719, %v809
        %v826 = vadd.f32 %v724, %v810
        %v827 = vadd.f32 %v727, %v811
        %v828 = vadd.f32 %v732, %v812
        %v829 = vadd.f32 %v735, %v813
        %v830 = vadd.f32 %v740, %v814
        %v831 = vadd.f32 %v743, %v815
        %v832 = vadd.f32 %v748, %v816
        %v833 = vadd.f32 %v751, %v817
        %v834 = vmul.f32 %v818, 0.7978846
        %v835 = vmul.f32 %v819, 0.7978846
        %v836 = vmul.f32 %v820, 0.7978846
        %v837 = vmul.f32 %v821, 0.7978846
        %v838 = vmul.f32 %v822, 0.7978846
        %v839 = vmul.f32 %v823, 0.7978846
        %v840 = vmul.f32 %v824, 0.7978846
        %v841 = vmul.f32 %v825, 0.7978846
        %v842 = vmul.f32 %v826, 0.7978846
        %v843 = vmul.f32 %v827, 0.7978846
        %v844 = vmul.f32 %v828, 0.7978846
        %v845 = vmul.f32 %v829, 0.7978846
        %v846 = vmul.f32 %v830, 0.7978846
        %v847 = vmul.f32 %v831, 0.7978846
        %v848 = vmul.f32 %v832, 0.7978846
        %v849 = vmul.f32 %v833, 0.7978846
        %v850 = vtanh.pop %v834
        %v851 = vtanh.pop %v835
        %v852 = vtanh.pop %v836
        %v853 = vtanh.pop %v837
        %v854 = vtanh.pop %v838
        %v855 = vtanh.pop %v839
        %v856 = vtanh.pop %v840
        %v857 = vtanh.pop %v841
        %v858 = vtanh.pop %v842
        %v859 = vtanh.pop %v843
        %v860 = vtanh.pop %v844
        %v861 = vtanh.pop %v845
        %v862 = vtanh.pop %v846
        %v863 = vtanh.pop %v847
        %v864 = vtanh.pop %v848
        %v865 = vtanh.pop %v849
        %v866 = vadd.f32 %v850, 1.0
        %v867 = vadd.f32 %v851, 1.0
        %v868 = vadd.f32 %v852, 1.0
        %v869 = vadd.f32 %v853, 1.0
        %v870 = vadd.f32 %v854, 1.0
        %v871 = vadd.f32 %v855, 1.0
        %v872 = vadd.f32 %v856, 1.0
        %v873 = vadd.f32 %v857, 1.0
        %v874 = vadd.f32 %v858, 1.0
        %v875 = vadd.f32 %v859, 1.0
        %v876 = vadd.f32 %v860, 1.0
        %v877 = vadd.f32 %v861, 1.0
        %v878 = vadd.f32 %v862, 1.0
        %v879 = vadd.f32 %v863, 1.0
        %v880 = vadd.f32 %v864, 1.0
        %v881 = vadd.f32 %v865, 1.0
        %v882 = vmul.f32 %v754, %v866
        %v883 = vmul.f32 %v755, %v867
        %v884 = vmul.f32 %v756, %v868
        %v885 = vmul.f32 %v757, %v869
        %v886 = vmul.f32 %v758, %v870
        %v887 = vmul.f32 %v759, %v871
        %v888 = vmul.f32 %v760, %v872
        %v889 = vmul.f32 %v761, %v873
        %v890 = vmul.f32 %v762, %v874
        %v891 = vmul.f32 %v763, %v875
        %v892 = vmul.f32 %v764, %v876
        %v893 = vmul.f32 %v765, %v877
        %v894 = vmul.f32 %v766, %v878
        %v895 = vmul.f32 %v767, %v879
        %v896 = vmul.f32 %v768, %v880
        %v897 = vmul.f32 %v769, %v881
        %v898 = vsel %vm392, %v882, 0.0
        %899 = vadd.xlane.f32.xlu0 %v898
        %v900 = vpop.xlane.xlu0 %899
        %v901 = vsel %vm392, %v883, 0.0
        %902 = vadd.xlane.f32.xlu0 %v901
        %v903 = vpop.xlane.xlu0 %902
        %v904 = vsel %vm392, %v884, 0.0
        %905 = vadd.xlane.f32.xlu0 %v904
        %v906 = vpop.xlane.xlu0 %905
        %v907 = vsel %vm392, %v885, 0.0
        %908 = vadd.xlane.f32.xlu0 %v907
        %v909 = vpop.xlane.xlu0 %908
        %v910 = vsel %vm392, %v886, 0.0
        %911 = vadd.xlane.f32.xlu0 %v910
        %v912 = vpop.xlane.xlu0 %911
        %v913 = vsel %vm392, %v887, 0.0
        %914 = vadd.xlane.f32.xlu0 %v913
        %v915 = vpop.xlane.xlu0 %914
        %v916 = vsel %vm392, %v888, 0.0
        %917 = vadd.xlane.f32.xlu0 %v916
        %v918 = vpop.xlane.xlu0 %917
        %v919 = vsel %vm392, %v889, 0.0
        %920 = vadd.xlane.f32.xlu0 %v919
        %v921 = vpop.xlane.xlu0 %920
        %v922 = vsel %vm392, %v890, 0.0
        %923 = vadd.xlane.f32.xlu0 %v922
        %v924 = vpop.xlane.xlu0 %923
        %v925 = vsel %vm392, %v891, 0.0
        %926 = vadd.xlane.f32.xlu0 %v925
        %v927 = vpop.xlane.xlu0 %926
        %v928 = vsel %vm392, %v892, 0.0
        %929 = vadd.xlane.f32.xlu0 %v928
        %v930 = vpop.xlane.xlu0 %929
        %v931 = vsel %vm392, %v893, 0.0
        %932 = vadd.xlane.f32.xlu0 %v931
        %v933 = vpop.xlane.xlu0 %932
        %v934 = vsel %vm392, %v894, 0.0
        %935 = vadd.xlane.f32.xlu0 %v934
        %v936 = vpop.xlane.xlu0 %935
        %v937 = vsel %vm392, %v895, 0.0
        %938 = vadd.xlane.f32.xlu0 %v937
        %v939 = vpop.xlane.xlu0 %938
        %v940 = vsel %vm392, %v896, 0.0
        %941 = vadd.xlane.f32.xlu0 %v940
        %v942 = vpop.xlane.xlu0 %941
        %v943 = vsel %vm392, %v897, 0.0
        %944 = vadd.xlane.f32.xlu0 %v943
        %v945 = vpop.xlane.xlu0 %944
        %v946 = vmul.f32 %v900, %v441
        %v947 = vmul.f32 %v903, %v441
        %v948 = vmul.f32 %v906, %v441
        %v949 = vmul.f32 %v909, %v441
        %v950 = vmul.f32 %v912, %v441
        %v951 = vmul.f32 %v915, %v441
        %v952 = vmul.f32 %v918, %v441
        %v953 = vmul.f32 %v921, %v441
        %v954 = vmul.f32 %v924, %v441
        %v955 = vmul.f32 %v927, %v441
        %v956 = vmul.f32 %v930, %v441
        %v957 = vmul.f32 %v933, %v441
        %v958 = vmul.f32 %v936, %v441
        %v959 = vmul.f32 %v939, %v441
        %v960 = vmul.f32 %v942, %v441
        %v961 = vmul.f32 %v945, %v441
        %v962 = vsub.f32 %v882, %v946
        %v963 = vsub.f32 %v883, %v947
        %v964 = vsub.f32 %v884, %v948
        %v965 = vsub.f32 %v885, %v949
        %v966 = vsub.f32 %v886, %v950
        %v967 = vsub.f32 %v887, %v951
        %v968 = vsub.f32 %v888, %v952
        %v969 = vsub.f32 %v889, %v953
        %v970 = vsub.f32 %v890, %v954
        %v971 = vsub.f32 %v891, %v955
        %v972 = vsub.f32 %v892, %v956
        %v973 = vsub.f32 %v893, %v957
        %v974 = vsub.f32 %v894, %v958
        %v975 = vsub.f32 %v895, %v959
        %v976 = vsub.f32 %v896, %v960
        %v977 = vsub.f32 %v897, %v961
        %v978 = vmul.f32 %v962, %v962
        %v979 = vmul.f32 %v963, %v963
        %v980 = vmul.f32 %v964, %v964
        %v981 = vmul.f32 %v965, %v965
        %v982 = vmul.f32 %v966, %v966
        %v983 = vmul.f32 %v967, %v967
        %v984 = vmul.f32 %v968, %v968
        %v985 = vmul.f32 %v969, %v969
        %v986 = vmul.f32 %v970, %v970
        %v987 = vmul.f32 %v971, %v971
        %v988 = vmul.f32 %v972, %v972
        %v989 = vmul.f32 %v973, %v973
        %v990 = vmul.f32 %v974, %v974
        %v991 = vmul.f32 %v975, %v975
        %v992 = vmul.f32 %v976, %v976
        %v993 = vmul.f32 %v977, %v977
        %v994 = vsel %vm392, %v978, 0.0
        %995 = vadd.xlane.f32.xlu0 %v994
        %v996 = vpop.xlane.xlu0 %995
        %v997 = vsel %vm392, %v979, 0.0
        %998 = vadd.xlane.f32.xlu0 %v997
        %v999 = vpop.xlane.xlu0 %998
        %v1000 = vsel %vm392, %v980, 0.0
        %1001 = vadd.xlane.f32.xlu0 %v1000
        %v1002 = vpop.xlane.xlu0 %1001
        %v1003 = vsel %vm392, %v981, 0.0
        %1004 = vadd.xlane.f32.xlu0 %v1003
        %v1005 = vpop.xlane.xlu0 %1004
        %v1006 = vsel %vm392, %v982, 0.0
        %1007 = vadd.xlane.f32.xlu0 %v1006
        %v1008 = vpop.xlane.xlu0 %1007
        %v1009 = vsel %vm392, %v983, 0.0
        %1010 = vadd.xlane.f32.xlu0 %v1009
        %v1011 = vpop.xlane.xlu0 %1010
        %v1012 = vsel %vm392, %v984, 0.0
        %1013 = vadd.xlane.f32.xlu0 %v1012
        %v1014 = vpop.xlane.xlu0 %1013
        %v1015 = vsel %vm392, %v985, 0.0
        %1016 = vadd.xlane.f32.xlu0 %v1015
        %v1017 = vpop.xlane.xlu0 %1016
        %v1018 = vsel %vm392, %v986, 0.0
        %1019 = vadd.xlane.f32.xlu0 %v1018
        %v1020 = vpop.xlane.xlu0 %1019
        %v1021 = vsel %vm392, %v987, 0.0
        %1022 = vadd.xlane.f32.xlu0 %v1021
        %v1023 = vpop.xlane.xlu0 %1022
        %v1024 = vsel %vm392, %v988, 0.0
        %1025 = vadd.xlane.f32.xlu0 %v1024
        %v1026 = vpop.xlane.xlu0 %1025
        %v1027 = vsel %vm392, %v989, 0.0
        %1028 = vadd.xlane.f32.xlu0 %v1027
        %v1029 = vpop.xlane.xlu0 %1028
        %v1030 = vsel %vm392, %v990, 0.0
        %1031 = vadd.xlane.f32.xlu0 %v1030
        %v1032 = vpop.xlane.xlu0 %1031
        %v1033 = vsel %vm392, %v991, 0.0
        %1034 = vadd.xlane.f32.xlu0 %v1033
        %v1035 = vpop.xlane.xlu0 %1034
        %v1036 = vsel %vm392, %v992, 0.0
        %1037 = vadd.xlane.f32.xlu0 %v1036
        %v1038 = vpop.xlane.xlu0 %1037
        %v1039 = vsel %vm392, %v993, 0.0
        %1040 = vadd.xlane.f32.xlu0 %v1039
        %v1041 = vpop.xlane.xlu0 %1040
        %v1042 = vmul.f32 %v996, %v441
        %v1043 = vmul.f32 %v999, %v441
        %v1044 = vmul.f32 %v1002, %v441
        %v1045 = vmul.f32 %v1005, %v441
        %v1046 = vmul.f32 %v1008, %v441
        %v1047 = vmul.f32 %v1011, %v441
        %v1048 = vmul.f32 %v1014, %v441
        %v1049 = vmul.f32 %v1017, %v441
        %v1050 = vmul.f32 %v1020, %v441
        %v1051 = vmul.f32 %v1023, %v441
        %v1052 = vmul.f32 %v1026, %v441
        %v1053 = vmul.f32 %v1029, %v441
        %v1054 = vmul.f32 %v1032, %v441
        %v1055 = vmul.f32 %v1035, %v441
        %v1056 = vmul.f32 %v1038, %v441
        %v1057 = vmul.f32 %v1041, %v441
        %v1058 = vadd.f32 %v1042, 1e-05
        %v1059 = vadd.f32 %v1043, 1e-05
        %v1060 = vadd.f32 %v1044, 1e-05
        %v1061 = vadd.f32 %v1045, 1e-05
        %v1062 = vadd.f32 %v1046, 1e-05
        %v1063 = vadd.f32 %v1047, 1e-05
        %v1064 = vadd.f32 %v1048, 1e-05
        %v1065 = vadd.f32 %v1049, 1e-05
        %v1066 = vadd.f32 %v1050, 1e-05
        %v1067 = vadd.f32 %v1051, 1e-05
        %v1068 = vadd.f32 %v1052, 1e-05
        %v1069 = vadd.f32 %v1053, 1e-05
        %v1070 = vadd.f32 %v1054, 1e-05
        %v1071 = vadd.f32 %v1055, 1e-05
        %v1072 = vadd.f32 %v1056, 1e-05
        %v1073 = vadd.f32 %v1057, 1e-05
        %v1074 = vrsqrt.pop %v1058
        %v1075 = vrsqrt.pop %v1059
        %v1076 = vrsqrt.pop %v1060
        %v1077 = vrsqrt.pop %v1061
        %v1078 = vrsqrt.pop %v1062
        %v1079 = vrsqrt.pop %v1063
        %v1080 = vrsqrt.pop %v1064
        %v1081 = vrsqrt.pop %v1065
        %v1082 = vrsqrt.pop %v1066
        %v1083 = vrsqrt.pop %v1067
        %v1084 = vrsqrt.pop %v1068
        %v1085 = vrsqrt.pop %v1069
        %v1086 = vrsqrt.pop %v1070
        %v1087 = vrsqrt.pop %v1071
        %v1088 = vrsqrt.pop %v1072
        %v1089 = vrsqrt.pop %v1073
        %v1090 = vmul.f32 %v962, %v1074
        %v1091 = vmul.f32 %v963, %v1075
        %v1092 = vmul.f32 %v964, %v1076
        %v1093 = vmul.f32 %v965, %v1077
        %v1094 = vmul.f32 %v966, %v1078
        %v1095 = vmul.f32 %v967, %v1079
        %v1096 = vmul.f32 %v968, %v1080
        %v1097 = vmul.f32 %v969, %v1081
        %v1098 = vmul.f32 %v970, %v1082
        %v1099 = vmul.f32 %v971, %v1083
        %v1100 = vmul.f32 %v972, %v1084
        %v1101 = vmul.f32 %v973, %v1085
        %v1102 = vmul.f32 %v974, %v1086
        %v1103 = vmul.f32 %v975, %v1087
        %v1104 = vmul.f32 %v976, %v1088
        %v1105 = vmul.f32 %v977, %v1089
        %v1106 = vpack.c.bf16 %v1091, %v1090
        %v1107 = vpack.c.bf16 %v1093, %v1092
        %v1108 = vpack.c.bf16 %v1095, %v1094
        %v1109 = vpack.c.bf16 %v1097, %v1096
        %v1110 = vpack.c.bf16 %v1099, %v1098
        %v1111 = vpack.c.bf16 %v1101, %v1100
        %v1112 = vpack.c.bf16 %v1103, %v1102
        %v1113 = vpack.c.bf16 %v1105, %v1104
        %v1114 = vld [vmem:[#allocation9] sm:$0xf]
        %v1115 = vld [vmem:[#allocation9 + $0x4] sm:$0xf]
        %v1116 = vld [vmem:[#allocation9 + $0x8] sm:$0xf]
        %v1117 = vld [vmem:[#allocation9 + $0xc] sm:$0xf]
        %v1118 = vld [vmem:[%s5] sm:$0x1]
        %v1120 = vlaneseq
        %v1121 = vshrl.u32 %v1120, 7
        %v1122 = vsub.s32 0, %v1121
        %v1123 = vrot.slane %v1118, %v1122
        %v1129 = vunpack.c.l.b16 %v1114
        %v1130 = vunpack.c.l.b16 %v1115
        %v1131 = vunpack.c.l.b16 %v1116
        %v1132 = vunpack.c.l.b16 %v1117
        %v1133 = vpack.c.b16 %v1130, %v1129
        %v1134 = vpack.c.b16 %v1132, %v1131
        %v1138 = vsel %vm392, %v1106, 0
        %v1141 = vsel %vm392, %v1107, 0
        %v1144 = vsel %vm392, %v1108, 0
        %v1147 = vsel %vm392, %v1109, 0
        %v1150 = vsel %vm392, %v1110, 0
        %v1153 = vsel %vm392, %v1111, 0
        %v1156 = vsel %vm392, %v1112, 0
        %v1159 = vsel %vm392, %v1113, 0
        %1161 = vmatprep.subr.bf16.mxu0 0
        %1162 = vmatpush1.bf16.msra.mxu0 %v1133
        %1163 = vmatprep.subr.bf16.mxu0 0
        %1164 = vmatpush1.bf16.msra.mxu0 %v1134
        %1165 = vmatprep.subr.bf16.mxu0 0
        %1166 = vmatpush1.bf16.msra.mxu0 0
        %1167 = vmatprep.subr.bf16.mxu0 0
        %1168 = vmatpush1.bf16.msra.mxu0 0
        %1169 = vmatprep.subr.bf16.mxu0 0
        %1170 = vmatpush1.bf16.msra.mxu0 0
        %1171 = vmatprep.subr.bf16.mxu0 0
        %1172 = vmatpush1.bf16.msra.mxu0 0
        %1173 = vmatprep.subr.bf16.mxu0 0
        %1174 = vmatpush1.bf16.msra.mxu0 0
        %1175 = vmatprep.subr.bf16.mxu0 0
        %1176 = vmatpush1.bf16.msra.mxu0 0
        %1177 = vmatprep.subr.bf16.mxu0 0
        %1178 = vmatpush1.bf16.msra.mxu0 0
        %1179 = vmatprep.subr.bf16.mxu0 0
        %1180 = vmatpush1.bf16.msra.mxu0 0
        %1181 = vmatprep.subr.bf16.mxu0 0
        %1182 = vmatpush1.bf16.msra.mxu0 0
        %1183 = vmatprep.subr.bf16.mxu0 0
        %1184 = vmatpush1.bf16.msra.mxu0 0
        %1185 = vmatprep.subr.bf16.mxu0 0
        %1186 = vmatpush1.bf16.msra.mxu0 0
        %1187 = vmatprep.subr.bf16.mxu0 0
        %1188 = vmatpush1.bf16.msra.mxu0 0
        %1189 = vmatprep.subr.bf16.mxu0 0
        %1190 = vmatpush1.bf16.msra.mxu0 0
        %1191 = vmatprep.subr.bf16.mxu0 0
        %1192 = vmatpush1.bf16.msra.mxu0 0
        %1193 = vmatprep.mubr.bf16.mxu0 0
        %1194 = vmatmul.mubr.bf16.gmra.mrb[0].mxu0 %v1138
        %v1195 = vpop.f32.mrb[0].mxu0
        %v1196 = vadd.f32 %v1123, %v1195
        %v1197 = vpop.f32.mrb[0].mxu0
        %v1198 = vpop.f32.mrb[0].mxu0
        %v1199 = vadd.f32 %v1123, %v1198
        %v1200 = vpop.f32.mrb[0].mxu0
        %1201 = vmatprep.mubr.bf16.mxu0 0
        %1202 = vmatmul.mubr.bf16.gmra.mrb[0].mxu0 %v1141
        %v1203 = vpop.f32.mrb[0].mxu0
        %v1204 = vadd.f32 %v1123, %v1203
        %v1205 = vpop.f32.mrb[0].mxu0
        %v1206 = vpop.f32.mrb[0].mxu0
        %v1207 = vadd.f32 %v1123, %v1206
        %v1208 = vpop.f32.mrb[0].mxu0
        %1209 = vmatprep.mubr.bf16.mxu0 0
        %1210 = vmatmul.mubr.bf16.gmra.mrb[0].mxu0 %v1144
        %v1211 = vpop.f32.mrb[0].mxu0
        %v1212 = vadd.f32 %v1123, %v1211
        %v1213 = vpop.f32.mrb[0].mxu0
        %v1214 = vpop.f32.mrb[0].mxu0
        %v1215 = vadd.f32 %v1123, %v1214
        %v1216 = vpop.f32.mrb[0].mxu0
        %1217 = vmatprep.mubr.bf16.mxu0 0
        %1218 = vmatmul.mubr.bf16.gmra.mrb[0].mxu0 %v1147
        %v1219 = vpop.f32.mrb[0].mxu0
        %v1220 = vadd.f32 %v1123, %v1219
        %v1221 = vpop.f32.mrb[0].mxu0
        %v1222 = vpop.f32.mrb[0].mxu0
        %v1223 = vadd.f32 %v1123, %v1222
        %v1224 = vpop.f32.mrb[0].mxu0
        %1225 = vmatprep.mubr.bf16.mxu0 0
        %1226 = vmatmul.mubr.bf16.gmra.mrb[0].mxu0 %v1150
        %v1227 = vpop.f32.mrb[0].mxu0
        %v1228 = vadd.f32 %v1123, %v1227
        %v1229 = vpop.f32.mrb[0].mxu0
        %v1230 = vpop.f32.mrb[0].mxu0
        %v1231 = vadd.f32 %v1123, %v1230
        %v1232 = vpop.f32.mrb[0].mxu0
        %1233 = vmatprep.mubr.bf16.mxu0 0
        %1234 = vmatmul.mubr.bf16.gmra.mrb[0].mxu0 %v1153
        %v1235 = vpop.f32.mrb[0].mxu0
        %v1236 = vadd.f32 %v1123, %v1235
        %v1237 = vpop.f32.mrb[0].mxu0
        %v1238 = vpop.f32.mrb[0].mxu0
        %v1239 = vadd.f32 %v1123, %v1238
        %v1240 = vpop.f32.mrb[0].mxu0
        %1241 = vmatprep.mubr.bf16.mxu0 0
        %1242 = vmatmul.mubr.bf16.gmra.mrb[0].mxu0 %v1156
        %v1243 = vpop.f32.mrb[0].mxu0
        %v1244 = vadd.f32 %v1123, %v1243
        %v1245 = vpop.f32.mrb[0].mxu0
        %v1246 = vpop.f32.mrb[0].mxu0
        %v1247 = vadd.f32 %v1123, %v1246
        %v1248 = vpop.f32.mrb[0].mxu0
        %1249 = vmatprep.mubr.bf16.mxu0 0
        %1250 = vmatmul.mubr.bf16.gmra.mrb[0].mxu0 %v1159
        %v1251 = vpop.f32.mrb[0].mxu0
        %v1252 = vadd.f32 %v1123, %v1251
        %v1253 = vpop.f32.mrb[0].mxu0
        %v1254 = vpop.f32.mrb[0].mxu0
        %v1255 = vadd.f32 %v1123, %v1254
        %v1256 = vpop.f32.mrb[0].mxu0
        %1257 = vdwg.mxu0
        // Predicated region
        $region65: #{tpu_custom_call.1} parent=43 // pred_check
          %p1258 = pneg %p370
        $region66: #{tpu_custom_call.1} parent=43 // pred_check_branch
          %1260 = sbr.rel (%p1258) target = $region68
        $region67: #{tpu_custom_call.1} parent=43 // pred_region
          %s1261 = smul.u32 %s32, 16
          %v1262 = vlaneseq
          %v1263 = vshrl.u32 %v1262, 7
          %v1264 = vadd.s32 %v1263, 8
          %v1265 = vstv %s1261
          %v1266 = vadd.s32 %v1265, %v1263
          %v1267 = vadd.s32 %v1265, %v1264
          %vm1268 = vcmp.lt.s32.totalorder %v1266, 12
          %vm1269 = vcmp.lt.s32.totalorder %v1267, 12
          %v1270 = vsel %vm1268, 1, 0
          %v1271 = vsel %vm1269, 1, 0
          %vm1272 = vcmp.eq.s32.totalorder %v1270, 1
          %vm1273 = vcmp.eq.s32.totalorder %v1271, 1
          %v1274 = vsel %vm1272, %v1196, 0.0
          %v1275 = vsel %vm1273, %v1199, 0.0
          %v1276 = vsel %vm1272, %v1204, 0.0
          %v1277 = vsel %vm1273, %v1207, 0.0
          %v1278 = vsel %vm1272, %v1212, 0.0
          %v1279 = vsel %vm1273, %v1215, 0.0
          %v1280 = vsel %vm1272, %v1220, 0.0
          %v1281 = vsel %vm1273, %v1223, 0.0
          %v1282 = vsel %vm1272, %v1228, 0.0
          %v1283 = vsel %vm1273, %v1231, 0.0
          %v1284 = vsel %vm1272, %v1236, 0.0
          %v1285 = vsel %vm1273, %v1239, 0.0
          %v1286 = vsel %vm1272, %v1244, 0.0
          %v1287 = vsel %vm1273, %v1247, 0.0
          %v1288 = vsel %vm1272, %v1252, 0.0
          %v1289 = vsel %vm1273, %v1255, 0.0
          %v1290 = vld [vmem:[#allocation2] sm:$0xff]
          %v1291 = vsel %vm392, %v1274, 0.0
          %v1292 = vsel %vm392, %v1275, 0.0
          %v1293 = vadd.f32 %v1291, %v1292
          %v1294 = vrot.slane %v1293, 4
          %v1295 = vadd.f32 %v1293, %v1294
          %v1296 = vrot.slane %v1295, 2
          %v1297 = vadd.f32 %v1295, %v1296
          %v1298 = vrot.slane %v1297, 1
          %v1299 = vadd.f32 %v1297, %v1298
          %v1300 = vsel %vm392, %v1276, 0.0
          %v1301 = vsel %vm392, %v1277, 0.0
          %v1302 = vadd.f32 %v1300, %v1301
          %v1303 = vrot.slane %v1302, 4
          %v1304 = vadd.f32 %v1302, %v1303
          %v1305 = vrot.slane %v1304, 2
          %v1306 = vadd.f32 %v1304, %v1305
          %v1307 = vrot.slane %v1306, 1
          %v1308 = vadd.f32 %v1306, %v1307
          %v1309 = vsel %vm392, %v1278, 0.0
          %v1310 = vsel %vm392, %v1279, 0.0
          %v1311 = vadd.f32 %v1309, %v1310
          %v1312 = vrot.slane %v1311, 4
          %v1313 = vadd.f32 %v1311, %v1312
          %v1314 = vrot.slane %v1313, 2
          %v1315 = vadd.f32 %v1313, %v1314
          %v1316 = vrot.slane %v1315, 1
          %v1317 = vadd.f32 %v1315, %v1316
          %v1318 = vsel %vm392, %v1280, 0.0
          %v1319 = vsel %vm392, %v1281, 0.0
          %v1320 = vadd.f32 %v1318, %v1319
          %v1321 = vrot.slane %v1320, 4
          %v1322 = vadd.f32 %v1320, %v1321
          %v1323 = vrot.slane %v1322, 2
          %v1324 = vadd.f32 %v1322, %v1323
          %v1325 = vrot.slane %v1324, 1
          %v1326 = vadd.f32 %v1324, %v1325
          %v1327 = vsel %vm392, %v1282, 0.0
          %v1328 = vsel %vm392, %v1283, 0.0
          %v1329 = vadd.f32 %v1327, %v1328
          %v1330 = vrot.slane %v1329, 4
          %v1331 = vadd.f32 %v1329, %v1330
          %v1332 = vrot.slane %v1331, 2
          %v1333 = vadd.f32 %v1331, %v1332
          %v1334 = vrot.slane %v1333, 1
          %v1335 = vadd.f32 %v1333, %v1334
          %v1336 = vsel %vm392, %v1284, 0.0
          %v1337 = vsel %vm392, %v1285, 0.0
          %v1338 = vadd.f32 %v1336, %v1337
          %v1339 = vrot.slane %v1338, 4
          %v1340 = vadd.f32 %v1338, %v1339
          %v1341 = vrot.slane %v1340, 2
          %v1342 = vadd.f32 %v1340, %v1341
          %v1343 = vrot.slane %v1342, 1
          %v1344 = vadd.f32 %v1342, %v1343
          %v1345 = vsel %vm392, %v1286, 0.0
          %v1346 = vsel %vm392, %v1287, 0.0
          %v1347 = vadd.f32 %v1345, %v1346
          %v1348 = vrot.slane %v1347, 4
          %v1349 = vadd.f32 %v1347, %v1348
          %v1350 = vrot.slane %v1349, 2
          %v1351 = vadd.f32 %v1349, %v1350
          %v1352 = vrot.slane %v1351, 1
          %v1353 = vadd.f32 %v1351, %v1352
          %v1354 = vsel %vm392, %v1288, 0.0
          %v1355 = vsel %vm392, %v1289, 0.0
          %v1356 = vadd.f32 %v1354, %v1355
          %v1357 = vrot.slane %v1356, 4
          %v1358 = vadd.f32 %v1356, %v1357
          %v1359 = vrot.slane %v1358, 2
          %v1360 = vadd.f32 %v1358, %v1359
          %v1361 = vrot.slane %v1360, 1
          %v1362 = vadd.f32 %v1360, %v1361
          %vm1371 = vcmask 1041409
          %v1372 = vsel %vm1371, %v1308, %v1299
          %vm1373 = vcmask 1042434
          %v1374 = vsel %vm1373, %v1317, %v1372
          %vm1375 = vcmask 1043459
          %v1376 = vsel %vm1375, %v1326, %v1374
          %vm1377 = vcmask 1044484
          %v1378 = vsel %vm1377, %v1335, %v1376
          %vm1379 = vcmask 1045509
          %v1380 = vsel %vm1379, %v1344, %v1378
          %vm1381 = vcmask 1046534
          %v1382 = vsel %vm1381, %v1353, %v1380
          %vm1383 = vcmask 1047559
          %v1384 = vsel %vm1383, %v1362, %v1382
          %v1386 = vadd.f32 %v1290, %v1384
          %1387 = vst.msk [vmem:[#allocation2] sm:$0xff] %vm392, %v1386
        $region68: #{tpu_custom_call.1} parent=43 // pred_fallthru
          _
        %p1388 = scmp.ne.s32.totalorder %s32, 0
        // Predicated region
        $region69: #{tpu_custom_call.1} parent=43 // pred_check
          %p1389 = pneg %p1388
        $region70: #{tpu_custom_call.1} parent=43 // pred_check_branch
          %1391 = sbr.rel (%p1389) target = $region72
        $region71: #{tpu_custom_call.1} parent=43 // pred_region
          %v1392 = vld [vmem:[#allocation2] sm:$0xff]
          %v1393 = vsel %vm392, %v1196, 0.0
          %v1394 = vsel %vm392, %v1199, 0.0
          %v1395 = vadd.f32 %v1393, %v1394
          %v1396 = vrot.slane %v1395, 4
          %v1397 = vadd.f32 %v1395, %v1396
          %v1398 = vrot.slane %v1397, 2
          %v1399 = vadd.f32 %v1397, %v1398
          %v1400 = vrot.slane %v1399, 1
          %v1401 = vadd.f32 %v1399, %v1400
          %v1402 = vsel %vm392, %v1204, 0.0
          %v1403 = vsel %vm392, %v1207, 0.0
          %v1404 = vadd.f32 %v1402, %v1403
          %v1405 = vrot.slane %v1404, 4
          %v1406 = vadd.f32 %v1404, %v1405
          %v1407 = vrot.slane %v1406, 2
          %v1408 = vadd.f32 %v1406, %v1407
          %v1409 = vrot.slane %v1408, 1
          %v1410 = vadd.f32 %v1408, %v1409
          %v1411 = vsel %vm392, %v1212, 0.0
          %v1412 = vsel %vm392, %v1215, 0.0
          %v1413 = vadd.f32 %v1411, %v1412
          %v1414 = vrot.slane %v1413, 4
          %v1415 = vadd.f32 %v1413, %v1414
          %v1416 = vrot.slane %v1415, 2
          %v1417 = vadd.f32 %v1415, %v1416
          %v1418 = vrot.slane %v1417, 1
          %v1419 = vadd.f32 %v1417, %v1418
          %v1420 = vsel %vm392, %v1220, 0.0
          %v1421 = vsel %vm392, %v1223, 0.0
          %v1422 = vadd.f32 %v1420, %v1421
          %v1423 = vrot.slane %v1422, 4
          %v1424 = vadd.f32 %v1422, %v1423
          %v1425 = vrot.slane %v1424, 2
          %v1426 = vadd.f32 %v1424, %v1425
          %v1427 = vrot.slane %v1426, 1
          %v1428 = vadd.f32 %v1426, %v1427
          %v1429 = vsel %vm392, %v1228, 0.0
          %v1430 = vsel %vm392, %v1231, 0.0
          %v1431 = vadd.f32 %v1429, %v1430
          %v1432 = vrot.slane %v1431, 4
          %v1433 = vadd.f32 %v1431, %v1432
          %v1434 = vrot.slane %v1433, 2
          %v1435 = vadd.f32 %v1433, %v1434
          %v1436 = vrot.slane %v1435, 1
          %v1437 = vadd.f32 %v1435, %v1436
          %v1438 = vsel %vm392, %v1236, 0.0
          %v1439 = vsel %vm392, %v1239, 0.0
          %v1440 = vadd.f32 %v1438, %v1439
          %v1441 = vrot.slane %v1440, 4
          %v1442 = vadd.f32 %v1440, %v1441
          %v1443 = vrot.slane %v1442, 2
          %v1444 = vadd.f32 %v1442, %v1443
          %v1445 = vrot.slane %v1444, 1
          %v1446 = vadd.f32 %v1444, %v1445
          %v1447 = vsel %vm392, %v1244, 0.0
          %v1448 = vsel %vm392, %v1247, 0.0
          %v1449 = vadd.f32 %v1447, %v1448
          %v1450 = vrot.slane %v1449, 4
          %v1451 = vadd.f32 %v1449, %v1450
          %v1452 = vrot.slane %v1451, 2
          %v1453 = vadd.f32 %v1451, %v1452
          %v1454 = vrot.slane %v1453, 1
          %v1455 = vadd.f32 %v1453, %v1454
          %v1456 = vsel %vm392, %v1252, 0.0
          %v1457 = vsel %vm392, %v1255, 0.0
          %v1458 = vadd.f32 %v1456, %v1457
          %v1459 = vrot.slane %v1458, 4
          %v1460 = vadd.f32 %v1458, %v1459
          %v1461 = vrot.slane %v1460, 2
          %v1462 = vadd.f32 %v1460, %v1461
          %v1463 = vrot.slane %v1462, 1
          %v1464 = vadd.f32 %v1462, %v1463
          %vm1473 = vcmask 1041409
          %v1474 = vsel %vm1473, %v1410, %v1401
          %vm1475 = vcmask 1042434
          %v1476 = vsel %vm1475, %v1419, %v1474
          %vm1477 = vcmask 1043459
          %v1478 = vsel %vm1477, %v1428, %v1476
          %vm1479 = vcmask 1044484
          %v1480 = vsel %vm1479, %v1437, %v1478
          %vm1481 = vcmask 1045509
          %v1482 = vsel %vm1481, %v1446, %v1480
          %vm1483 = vcmask 1046534
          %v1484 = vsel %vm1483, %v1455, %v1482
          %vm1485 = vcmask 1047559
          %v1486 = vsel %vm1485, %v1464, %v1484
          %v1488 = vadd.f32 %v1392, %v1486
          %1489 = vst.msk [vmem:[#allocation2] sm:$0xff] %vm392, %v1488
        $region72: #{tpu_custom_call.1} parent=43 // pred_fallthru
          _
        // Predicated region
        $region73: #{tpu_custom_call.1} parent=43 // pred_check
          %p1490 = pneg %p370
        $region74: #{tpu_custom_call.1} parent=43 // pred_check_branch
          %1492 = sbr.rel (%p1490) target = $region76
        $region75: #{tpu_custom_call.1} parent=43 // pred_region
          %v1493 = vld [vmem:[#allocation2] sm:$0xff]
          %v1494 = vld [vmem:[#allocation6] sm:$0xff]
          %v1496 = vsel %vm392, %v1493, 0
          %v1499 = vsel %vm392, %v1494, 0
          %1501 = vmatprep.subr.mxu0 0.0
          %1502 = vmatpush1.xpose.msra.mxu0 %v1499
          %1503 = vmatprep.subr.mxu0 0.0
          %1504 = vmatpush1.xpose.msra.mxu0 0.0
          %1505 = vmatprep.subr.mxu0 0.0
          %1506 = vmatpush1.xpose.msra.mxu0 0.0
          %1507 = vmatprep.subr.mxu0 0.0
          %1508 = vmatpush1.xpose.msra.mxu0 0.0
          %1509 = vmatprep.subr.mxu0 0.0
          %1510 = vmatpush1.xpose.msra.mxu0 0.0
          %1511 = vmatprep.subr.mxu0 0.0
          %1512 = vmatpush1.xpose.msra.mxu0 0.0
          %1513 = vmatprep.subr.mxu0 0.0
          %1514 = vmatpush1.xpose.msra.mxu0 0.0
          %1515 = vmatprep.subr.mxu0 0.0
          %1516 = vmatpush1.xpose.msra.mxu0 0.0
          %1517 = vmatprep.subr.mxu0 0.0
          %1518 = vmatpush1.xpose.msra.mxu0 0.0
          %1519 = vmatprep.subr.mxu0 0.0
          %1520 = vmatpush1.xpose.msra.mxu0 0.0
          %1521 = vmatprep.subr.mxu0 0.0
          %1522 = vmatpush1.xpose.msra.mxu0 0.0
          %1523 = vmatprep.subr.mxu0 0.0
          %1524 = vmatpush1.xpose.msra.mxu0 0.0
          %1525 = vmatprep.subr.mxu0 0.0
          %1526 = vmatpush1.xpose.msra.mxu0 0.0
          %1527 = vmatprep.subr.mxu0 0.0
          %1528 = vmatpush1.xpose.msra.mxu0 0.0
          %1529 = vmatprep.subr.mxu0 0.0
          %1530 = vmatpush1.xpose.msra.mxu0 0.0
          %1531 = vmatprep.subr.mxu0 0.0
          %1532 = vmatpush1.xpose.msra.mxu0 0.0
          %1533 = vmatprep.subr.mxu0 0.0
          %1534 = vmatpush1.xpose.msra.mxu0 0.0
          %1535 = vmatprep.subr.mxu0 0.0
          %1536 = vmatpush1.xpose.msra.mxu0 0.0
          %1537 = vmatprep.subr.mxu0 0.0
          %1538 = vmatpush1.xpose.msra.mxu0 0.0
          %1539 = vmatprep.subr.mxu0 0.0
          %1540 = vmatpush1.xpose.msra.mxu0 0.0
          %1541 = vmatprep.subr.mxu0 0.0
          %1542 = vmatpush1.xpose.msra.mxu0 0.0
          %1543 = vmatprep.subr.mxu0 0.0
          %1544 = vmatpush1.xpose.msra.mxu0 0.0
          %1545 = vmatprep.subr.mxu0 0.0
          %1546 = vmatpush1.xpose.msra.mxu0 0.0
          %1547 = vmatprep.subr.mxu0 0.0
          %1548 = vmatpush1.xpose.msra.mxu0 0.0
          %1549 = vmatprep.subr.mxu0 0.0
          %1550 = vmatpush1.xpose.msra.mxu0 0.0
          %1551 = vmatprep.subr.mxu0 0.0
          %1552 = vmatpush1.xpose.msra.mxu0 0.0
          %1553 = vmatprep.subr.mxu0 0.0
          %1554 = vmatpush1.xpose.msra.mxu0 0.0
          %1555 = vmatprep.subr.mxu0 0.0
          %1556 = vmatpush1.xpose.msra.mxu0 0.0
          %1557 = vmatprep.subr.mxu0 0.0
          %1558 = vmatpush1.xpose.msra.mxu0 0.0
          %1559 = vmatprep.subr.mxu0 0.0
          %1560 = vmatpush1.xpose.msra.mxu0 0.0
          %1561 = vmatprep.subr.mxu0 0.0
          %1562 = vmatpush1.xpose.msra.mxu0 0.0
          %1563 = vmatprep.subr.mxu0 0.0
          %1564 = vmatpush1.xpose.msra.mxu0 0.0
          %1565 = vmatprep.mubr.f32.mxu0 0.0
          %1566 = vmatmul.mubr.f32.gmra.mrb[0].mxu0 %v1496
          %v1567 = vpop.f32.mrb[0].mxu0
          %v1568 = vadd.f32 0.0, %v1567
          %v1569 = vpop.f32.mrb[0].mxu0
          %1570 = vdwg.mxu0
          %v1571 = vmul.f32 %v1568, 0.17677669
          %v1572 = vlaneseq
          %v1573 = vshrl.u32 %v1572, 7
          %v1574 = vsub.s32 0, %v1573
          %v1575 = vrot.slane %v1571, %v1574
          %1577 = vbcast.lane.b32.xlu0 %v1575, 256
          %v1578 = vpop.permute.xlu0 %1577
          %v1579 = vlaneseq
          %v1580 = vshrl.u32 %v1579, 7
          %v1581 = vsub.s32 1, %v1580
          %v1582 = vrot.slane %v1571, %v1581
          %1584 = vbcast.lane.b32.xlu0 %v1582, 256
          %v1585 = vpop.permute.xlu0 %1584
          %v1586 = vlaneseq
          %v1587 = vshrl.u32 %v1586, 7
          %v1588 = vsub.s32 2, %v1587
          %v1589 = vrot.slane %v1571, %v1588
          %1591 = vbcast.lane.b32.xlu0 %v1589, 256
          %v1592 = vpop.permute.xlu0 %1591
          %v1593 = vlaneseq
          %v1594 = vshrl.u32 %v1593, 7
          %v1595 = vsub.s32 3, %v1594
          %v1596 = vrot.slane %v1571, %v1595
          %1598 = vbcast.lane.b32.xlu0 %v1596, 256
          %v1599 = vpop.permute.xlu0 %1598
          %v1600 = vlaneseq
          %v1601 = vshrl.u32 %v1600, 7
          %v1602 = vsub.s32 4, %v1601
          %v1603 = vrot.slane %v1571, %v1602
          %1605 = vbcast.lane.b32.xlu0 %v1603, 256
          %v1606 = vpop.permute.xlu0 %1605
          %v1607 = vlaneseq
          %v1608 = vshrl.u32 %v1607, 7
          %v1609 = vsub.s32 5, %v1608
          %v1610 = vrot.slane %v1571, %v1609
          %1612 = vbcast.lane.b32.xlu0 %v1610, 256
          %v1613 = vpop.permute.xlu0 %1612
          %v1614 = vlaneseq
          %v1615 = vshrl.u32 %v1614, 7
          %v1616 = vsub.s32 6, %v1615
          %v1617 = vrot.slane %v1571, %v1616
          %1619 = vbcast.lane.b32.xlu0 %v1617, 256
          %v1620 = vpop.permute.xlu0 %1619
          %v1621 = vlaneseq
          %v1622 = vshrl.u32 %v1621, 7
          %v1623 = vsub.s32 7, %v1622
          %v1624 = vrot.slane %v1571, %v1623
          %1626 = vbcast.lane.b32.xlu0 %v1624, 256
          %v1627 = vpop.permute.xlu0 %1626
          %v1629 = vcombine.high %v1571, %v1571
          %v1631 = vunpack.c.l.s4 1966171168
          %v1632 = vunpack.c.0.s8 %v1631
          %v1633 = vlaneseq
          %v1634 = vshrl.u32 %v1633, 7
          %v1635 = vsub.s32 %v1632, %v1634
          %v1636 = vrot.slane %v1571, %v1635
          %v1638 = vunpack.c.l.s4 1966171168
          %v1639 = vunpack.c.0.s8 %v1638
          %v1640 = vlaneseq
          %v1641 = vshrl.u32 %v1640, 7
          %v1642 = vsub.s32 %v1639, %v1641
          %v1643 = vrot.slane %v1629, %v1642
          %v1644 = vcombine.high %v1636, %v1636
          %v1645 = vcombine.high %v1643, %v1643
          %v1647 = vunpack.c.l.s4 1966171168
          %v1648 = vunpack.c.0.s8 %v1647
          %v1649 = vlaneseq
          %v1650 = vshrl.u32 %v1649, 7
          %v1651 = vsub.s32 %v1648, %v1650
          %v1652 = vrot.slane %v1636, %v1651
          %v1654 = vunpack.c.l.s4 1966171168
          %v1655 = vunpack.c.0.s8 %v1654
          %v1656 = vlaneseq
          %v1657 = vshrl.u32 %v1656, 7
          %v1658 = vsub.s32 %v1655, %v1657
          %v1659 = vrot.slane %v1643, %v1658
          %v1661 = vunpack.c.l.s4 1966171168
          %v1662 = vunpack.c.0.s8 %v1661
          %v1663 = vlaneseq
          %v1664 = vshrl.u32 %v1663, 7
          %v1665 = vsub.s32 %v1662, %v1664
          %v1666 = vrot.slane %v1644, %v1665
          %v1668 = vunpack.c.l.s4 1966171168
          %v1669 = vunpack.c.0.s8 %v1668
          %v1670 = vlaneseq
          %v1671 = vshrl.u32 %v1670, 7
          %v1672 = vsub.s32 %v1669, %v1671
          %v1673 = vrot.slane %v1645, %v1672
          %v1674 = vcombine.high %v1652, %v1652
          %v1675 = vcombine.high %v1659, %v1659
          %v1676 = vcombine.high %v1666, %v1666
          %v1677 = vcombine.high %v1673, %v1673
          %v1678 = vlaneseq
          %v1679 = vshrl.u32 %v1678, 7
          %v1680 = vsub.s32 0, %v1679
          %v1681 = vrot.slane %v1652, %v1680
          %v1682 = vlaneseq
          %v1683 = vshrl.u32 %v1682, 7
          %v1684 = vsub.s32 0, %v1683
          %v1685 = vrot.slane %v1666, %v1684
          %v1686 = vlaneseq
          %v1687 = vshrl.u32 %v1686, 7
          %v1688 = vsub.s32 0, %v1687
          %v1689 = vrot.slane %v1674, %v1688
          %v1690 = vlaneseq
          %v1691 = vshrl.u32 %v1690, 7
          %v1692 = vsub.s32 0, %v1691
          %v1693 = vrot.slane %v1676, %v1692
          %v1694 = vlaneseq
          %v1695 = vshrl.u32 %v1694, 7
          %v1696 = vsub.s32 0, %v1695
          %v1697 = vrot.slane %v1659, %v1696
          %v1698 = vlaneseq
          %v1699 = vshrl.u32 %v1698, 7
          %v1700 = vsub.s32 0, %v1699
          %v1701 = vrot.slane %v1673, %v1700
          %v1702 = vlaneseq
          %v1703 = vshrl.u32 %v1702, 7
          %v1704 = vsub.s32 0, %v1703
          %v1705 = vrot.slane %v1675, %v1704
          %v1706 = vlaneseq
          %v1707 = vshrl.u32 %v1706, 7
          %v1708 = vsub.s32 0, %v1707
          %v1709 = vrot.slane %v1677, %v1708
          %vm1718 = vcmp.ge.f32.partialorder %v1681, %v1578
          %vm1719 = vcmp.ge.f32.partialorder %v1685, %v1585
          %vm1720 = vcmp.ge.f32.partialorder %v1689, %v1592
          %vm1721 = vcmp.ge.f32.partialorder %v1693, %v1599
          %vm1722 = vcmp.ge.f32.partialorder %v1697, %v1606
          %vm1723 = vcmp.ge.f32.partialorder %v1701, %v1613
          %vm1724 = vcmp.ge.f32.partialorder %v1705, %v1620
          %vm1725 = vcmp.ge.f32.partialorder %v1709, %v1627
          %v1726 = vsel %vm1718, 1, 0
          %v1727 = vsel %vm1719, 1, 0
          %v1728 = vsel %vm1720, 1, 0
          %v1729 = vsel %vm1721, 1, 0
          %v1730 = vsel %vm1722, 1, 0
          %v1731 = vsel %vm1723, 1, 0
          %v1732 = vsel %vm1724, 1, 0
          %v1733 = vsel %vm1725, 1, 0
          %v1734 = vcvt.s32.f32 %v1726
          %v1735 = vcvt.s32.f32 %v1727
          %v1736 = vcvt.s32.f32 %v1728
          %v1737 = vcvt.s32.f32 %v1729
          %v1738 = vcvt.s32.f32 %v1730
          %v1739 = vcvt.s32.f32 %v1731
          %v1740 = vcvt.s32.f32 %v1732
          %v1741 = vcvt.s32.f32 %v1733
          %vm1742 = vcmask 64512
          %v1743 = vsel %vm1742, %v1734, 0.0
          %1744 = vadd.xlane.f32.xlu0 %v1743
          %v1745 = vpop.xlane.xlu0 %1744
          %v1746 = vsel %vm1742, %v1735, 0.0
          %1747 = vadd.xlane.f32.xlu0 %v1746
          %v1748 = vpop.xlane.xlu0 %1747
          %v1749 = vsel %vm1742, %v1736, 0.0
          %1750 = vadd.xlane.f32.xlu0 %v1749
          %v1751 = vpop.xlane.xlu0 %1750
          %v1752 = vsel %vm1742, %v1737, 0.0
          %1753 = vadd.xlane.f32.xlu0 %v1752
          %v1754 = vpop.xlane.xlu0 %1753
          %v1755 = vsel %vm1742, %v1738, 0.0
          %1756 = vadd.xlane.f32.xlu0 %v1755
          %v1757 = vpop.xlane.xlu0 %1756
          %v1758 = vsel %vm1742, %v1739, 0.0
          %1759 = vadd.xlane.f32.xlu0 %v1758
          %v1760 = vpop.xlane.xlu0 %1759
          %v1761 = vsel %vm1742, %v1740, 0.0
          %1762 = vadd.xlane.f32.xlu0 %v1761
          %v1763 = vpop.xlane.xlu0 %1762
          %v1764 = vsel %vm1742, %v1741, 0.0
          %1765 = vadd.xlane.f32.xlu0 %v1764
          %v1766 = vpop.xlane.xlu0 %1765
          %v1767 = vmul.f32 %v1734, %v1681
          %v1768 = vmul.f32 %v1735, %v1685
          %v1769 = vmul.f32 %v1736, %v1689
          %v1770 = vmul.f32 %v1737, %v1693
          %v1771 = vmul.f32 %v1738, %v1697
          %v1772 = vmul.f32 %v1739, %v1701
          %v1773 = vmul.f32 %v1740, %v1705
          %v1774 = vmul.f32 %v1741, %v1709
          %v1775 = vsel %vm1742, %v1767, 0.0
          %1776 = vadd.xlane.f32.xlu0 %v1775
          %v1777 = vpop.xlane.xlu0 %1776
          %v1778 = vsel %vm1742, %v1768, 0.0
          %1779 = vadd.xlane.f32.xlu0 %v1778
          %v1780 = vpop.xlane.xlu0 %1779
          %v1781 = vsel %vm1742, %v1769, 0.0
          %1782 = vadd.xlane.f32.xlu0 %v1781
          %v1783 = vpop.xlane.xlu0 %1782
          %v1784 = vsel %vm1742, %v1770, 0.0
          %1785 = vadd.xlane.f32.xlu0 %v1784
          %v1786 = vpop.xlane.xlu0 %1785
          %v1787 = vsel %vm1742, %v1771, 0.0
          %1788 = vadd.xlane.f32.xlu0 %v1787
          %v1789 = vpop.xlane.xlu0 %1788
          %v1790 = vsel %vm1742, %v1772, 0.0
          %1791 = vadd.xlane.f32.xlu0 %v1790
          %v1792 = vpop.xlane.xlu0 %1791
          %v1793 = vsel %vm1742, %v1773, 0.0
          %1794 = vadd.xlane.f32.xlu0 %v1793
          %v1795 = vpop.xlane.xlu0 %1794
          %v1796 = vsel %vm1742, %v1774, 0.0
          %1797 = vadd.xlane.f32.xlu0 %v1796
          %v1798 = vpop.xlane.xlu0 %1797
          %v1799 = vlaneseq
          %v1800 = vshrl.u32 %v1799, 7
          %v1801 = vsub.s32 0, %v1800
          %v1802 = vrot.slane %v1571, %v1801
          %1804 = vbcast.lane.b32.xlu0 %v1802, 256
          %v1805 = vpop.permute.xlu0 %1804
          %v1806 = vlaneseq
          %v1807 = vshrl.u32 %v1806, 7
          %v1808 = vsub.s32 1, %v1807
          %v1809 = vrot.slane %v1571, %v1808
          %1811 = vbcast.lane.b32.xlu0 %v1809, 256
          %v1812 = vpop.permute.xlu0 %1811
          %v1813 = vlaneseq
          %v1814 = vshrl.u32 %v1813, 7
          %v1815 = vsub.s32 2, %v1814
          %v1816 = vrot.slane %v1571, %v1815
          %1818 = vbcast.lane.b32.xlu0 %v1816, 256
          %v1819 = vpop.permute.xlu0 %1818
          %v1820 = vlaneseq
          %v1821 = vshrl.u32 %v1820, 7
          %v1822 = vsub.s32 3, %v1821
          %v1823 = vrot.slane %v1571, %v1822
          %1825 = vbcast.lane.b32.xlu0 %v1823, 256
          %v1826 = vpop.permute.xlu0 %1825
          %v1827 = vlaneseq
          %v1828 = vshrl.u32 %v1827, 7
          %v1829 = vsub.s32 4, %v1828
          %v1830 = vrot.slane %v1571, %v1829
          %1832 = vbcast.lane.b32.xlu0 %v1830, 256
          %v1833 = vpop.permute.xlu0 %1832
          %v1834 = vlaneseq
          %v1835 = vshrl.u32 %v1834, 7
          %v1836 = vsub.s32 5, %v1835
          %v1837 = vrot.slane %v1571, %v1836
          %1839 = vbcast.lane.b32.xlu0 %v1837, 256
          %v1840 = vpop.permute.xlu0 %1839
          %v1841 = vlaneseq
          %v1842 = vshrl.u32 %v1841, 7
          %v1843 = vsub.s32 6, %v1842
          %v1844 = vrot.slane %v1571, %v1843
          %1846 = vbcast.lane.b32.xlu0 %v1844, 256
          %v1847 = vpop.permute.xlu0 %1846
          %v1848 = vlaneseq
          %v1849 = vshrl.u32 %v1848, 7
          %v1850 = vsub.s32 7, %v1849
          %v1851 = vrot.slane %v1571, %v1850
          %1853 = vbcast.lane.b32.xlu0 %v1851, 256
          %v1854 = vpop.permute.xlu0 %1853
          %v1863 = vmul.f32 %v1745, %v1805
          %v1864 = vmul.f32 %v1748, %v1812
          %v1865 = vmul.f32 %v1751, %v1819
          %v1866 = vmul.f32 %v1754, %v1826
          %v1867 = vmul.f32 %v1757, %v1833
          %v1868 = vmul.f32 %v1760, %v1840
          %v1869 = vmul.f32 %v1763, %v1847
          %v1870 = vmul.f32 %v1766, %v1854
          %v1871 = vadd.f32 %v1863, 1.0
          %v1872 = vadd.f32 %v1864, 1.0
          %v1873 = vadd.f32 %v1865, 1.0
          %v1874 = vadd.f32 %v1866, 1.0
          %v1875 = vadd.f32 %v1867, 1.0
          %v1876 = vadd.f32 %v1868, 1.0
          %v1877 = vadd.f32 %v1869, 1.0
          %v1878 = vadd.f32 %v1870, 1.0
          %vm1879 = vcmp.gt.f32.partialorder %v1871, %v1777
          %vm1880 = vcmp.gt.f32.partialorder %v1872, %v1780
          %vm1881 = vcmp.gt.f32.partialorder %v1873, %v1783
          %vm1882 = vcmp.gt.f32.partialorder %v1874, %v1786
          %vm1883 = vcmp.gt.f32.partialorder %v1875, %v1789
          %vm1884 = vcmp.gt.f32.partialorder %v1876, %v1792
          %vm1885 = vcmp.gt.f32.partialorder %v1877, %v1795
          %vm1886 = vcmp.gt.f32.partialorder %v1878, %v1798
          %v1887 = vsel %vm1879, 1, 0
          %v1888 = vsel %vm1880, 1, 0
          %v1889 = vsel %vm1881, 1, 0
          %v1890 = vsel %vm1882, 1, 0
          %v1891 = vsel %vm1883, 1, 0
          %v1892 = vsel %vm1884, 1, 0
          %v1893 = vsel %vm1885, 1, 0
          %v1894 = vsel %vm1886, 1, 0
          %v1895 = vcvt.s32.f32 %v1887
          %v1896 = vcvt.s32.f32 %v1888
          %v1897 = vcvt.s32.f32 %v1889
          %v1898 = vcvt.s32.f32 %v1890
          %v1899 = vcvt.s32.f32 %v1891
          %v1900 = vcvt.s32.f32 %v1892
          %v1901 = vcvt.s32.f32 %v1893
          %v1902 = vcvt.s32.f32 %v1894
          %1911 = vset.pattern.permute.xlu0 0
          %1912 = vperm.xlu0 %1911, %v1895
          %v1913 = vpop.permute.xlu0 %1912
          %1914 = vset.pattern.permute.xlu0 0
          %1915 = vperm.xlu0 %1914, %v1896
          %v1916 = vpop.permute.xlu0 %1915
          %1917 = vset.pattern.permute.xlu0 0
          %1918 = vperm.xlu0 %1917, %v1897
          %v1919 = vpop.permute.xlu0 %1918
          %1920 = vset.pattern.permute.xlu0 0
          %1921 = vperm.xlu0 %1920, %v1898
          %v1922 = vpop.permute.xlu0 %1921
          %1923 = vset.pattern.permute.xlu0 0
          %1924 = vperm.xlu0 %1923, %v1899
          %v1925 = vpop.permute.xlu0 %1924
          %1926 = vset.pattern.permute.xlu0 0
          %1927 = vperm.xlu0 %1926, %v1900
          %v1928 = vpop.permute.xlu0 %1927
          %1929 = vset.pattern.permute.xlu0 0
          %1930 = vperm.xlu0 %1929, %v1901
          %v1931 = vpop.permute.xlu0 %1930
          %1932 = vset.pattern.permute.xlu0 0
          %1933 = vperm.xlu0 %1932, %v1902
          %v1934 = vpop.permute.xlu0 %1933
          %v1935 = vlaneseq
          %v1936 = vand.u32 %v1935, 127
          %v1937 = vlaneseq
          %v1938 = vshrl.u32 %v1937, 7
          %v1939 = vsub.s32 %v1936, %v1938
          %v1940 = vrot.slane %v1913, %v1939
          %v1941 = vlaneseq
          %v1942 = vshrl.u32 %v1941, 7
          %v1943 = vsub.s32 %v1936, %v1942
          %v1944 = vrot.slane %v1916, %v1943
          %v1945 = vlaneseq
          %v1946 = vshrl.u32 %v1945, 7
          %v1947 = vsub.s32 %v1936, %v1946
          %v1948 = vrot.slane %v1919, %v1947
          %v1949 = vlaneseq
          %v1950 = vshrl.u32 %v1949, 7
          %v1951 = vsub.s32 %v1936, %v1950
          %v1952 = vrot.slane %v1922, %v1951
          %v1953 = vlaneseq
          %v1954 = vshrl.u32 %v1953, 7
          %v1955 = vsub.s32 %v1936, %v1954
          %v1956 = vrot.slane %v1925, %v1955
          %v1957 = vlaneseq
          %v1958 = vshrl.u32 %v1957, 7
          %v1959 = vsub.s32 %v1936, %v1958
          %v1960 = vrot.slane %v1928, %v1959
          %v1961 = vlaneseq
          %v1962 = vshrl.u32 %v1961, 7
          %v1963 = vsub.s32 %v1936, %v1962
          %v1964 = vrot.slane %v1931, %v1963
          %v1965 = vlaneseq
          %v1966 = vshrl.u32 %v1965, 7
          %v1967 = vsub.s32 %v1936, %v1966
          %v1968 = vrot.slane %v1934, %v1967
          %vm1969 = vcmask 1041409
          %v1970 = vsel %vm1969, %v1944, %v1940
          %vm1971 = vcmask 1042434
          %v1972 = vsel %vm1971, %v1948, %v1970
          %vm1973 = vcmask 1043459
          %v1974 = vsel %vm1973, %v1952, %v1972
          %vm1975 = vcmask 1044484
          %v1976 = vsel %vm1975, %v1956, %v1974
          %vm1977 = vcmask 1045509
          %v1978 = vsel %vm1977, %v1960, %v1976
          %vm1979 = vcmask 1046534
          %v1980 = vsel %vm1979, %v1964, %v1978
          %vm1981 = vcmask 1047559
          %v1982 = vsel %vm1981, %v1968, %v1980
          %v1984 = vsel %vm1742, %v1982, 0.0
          %1985 = vadd.xlane.f32.xlu0 %v1984
          %v1986 = vpop.xlane.xlu0 %1985
          %v1987 = vmul.f32 %v1895, %v1805
          %v1988 = vmul.f32 %v1896, %v1812
          %v1989 = vmul.f32 %v1897, %v1819
          %v1990 = vmul.f32 %v1898, %v1826
          %v1991 = vmul.f32 %v1899, %v1833
          %v1992 = vmul.f32 %v1900, %v1840
          %v1993 = vmul.f32 %v1901, %v1847
          %v1994 = vmul.f32 %v1902, %v1854
          %2003 = vset.pattern.permute.xlu0 0
          %2004 = vperm.xlu0 %2003, %v1987
          %v2005 = vpop.permute.xlu0 %2004
          %2006 = vset.pattern.permute.xlu0 0
          %2007 = vperm.xlu0 %2006, %v1988
          %v2008 = vpop.permute.xlu0 %2007
          %2009 = vset.pattern.permute.xlu0 0
          %2010 = vperm.xlu0 %2009, %v1989
          %v2011 = vpop.permute.xlu0 %2010
          %2012 = vset.pattern.permute.xlu0 0
          %2013 = vperm.xlu0 %2012, %v1990
          %v2014 = vpop.permute.xlu0 %2013
          %2015 = vset.pattern.permute.xlu0 0
          %2016 = vperm.xlu0 %2015, %v1991
          %v2017 = vpop.permute.xlu0 %2016
          %2018 = vset.pattern.permute.xlu0 0
          %2019 = vperm.xlu0 %2018, %v1992
          %v2020 = vpop.permute.xlu0 %2019
          %2021 = vset.pattern.permute.xlu0 0
          %2022 = vperm.xlu0 %2021, %v1993
          %v2023 = vpop.permute.xlu0 %2022
          %2024 = vset.pattern.permute.xlu0 0
          %2025 = vperm.xlu0 %2024, %v1994
          %v2026 = vpop.permute.xlu0 %2025
          %v2027 = vlaneseq
          %v2028 = vshrl.u32 %v2027, 7
          %v2029 = vsub.s32 %v1936, %v2028
          %v2030 = vrot.slane %v2005, %v2029
          %v2031 = vlaneseq
          %v2032 = vshrl.u32 %v2031, 7
          %v2033 = vsub.s32 %v1936, %v2032
          %v2034 = vrot.slane %v2008, %v2033
          %v2035 = vlaneseq
          %v2036 = vshrl.u32 %v2035, 7
          %v2037 = vsub.s32 %v1936, %v2036
          %v2038 = vrot.slane %v2011, %v2037
          %v2039 = vlaneseq
          %v2040 = vshrl.u32 %v2039, 7
          %v2041 = vsub.s32 %v1936, %v2040
          %v2042 = vrot.slane %v2014, %v2041
          %v2043 = vlaneseq
          %v2044 = vshrl.u32 %v2043, 7
          %v2045 = vsub.s32 %v1936, %v2044
          %v2046 = vrot.slane %v2017, %v2045
          %v2047 = vlaneseq
          %v2048 = vshrl.u32 %v2047, 7
          %v2049 = vsub.s32 %v1936, %v2048
          %v2050 = vrot.slane %v2020, %v2049
          %v2051 = vlaneseq
          %v2052 = vshrl.u32 %v2051, 7
          %v2053 = vsub.s32 %v1936, %v2052
          %v2054 = vrot.slane %v2023, %v2053
          %v2055 = vlaneseq
          %v2056 = vshrl.u32 %v2055, 7
          %v2057 = vsub.s32 %v1936, %v2056
          %v2058 = vrot.slane %v2026, %v2057
          %v2059 = vsel %vm1969, %v2034, %v2030
          %v2060 = vsel %vm1971, %v2038, %v2059
          %v2061 = vsel %vm1973, %v2042, %v2060
          %v2062 = vsel %vm1975, %v2046, %v2061
          %v2063 = vsel %vm1977, %v2050, %v2062
          %v2064 = vsel %vm1979, %v2054, %v2063
          %v2065 = vsel %vm1981, %v2058, %v2064
          %v2067 = vsel %vm1742, %v2065, 0.0
          %2068 = vadd.xlane.f32.xlu0 %v2067
          %v2069 = vpop.xlane.xlu0 %2068
          %v2070 = vsub.f32 %v2069, 1.0
          %v2071 = vrcp.pop %v1986
          %v2072 = vmul.f32 %v2070, %v2071
          %v2073 = vsub.f32 %v1571, %v2072
          %v2074 = vmax.f32 %v2073, 0.0
          %2075 = vst.msk [vmem:[%s368] sm:$0xff] %vm1742, %v2074
          %v2076 = vld [vmem:[#allocation6] sm:$0xff]
          %v2078 = vsel %vm1742, %v2074, 0
          %2080 = vmatprep.subr.mxu0 0.0
          %2081 = vmatpush1.msra.mxu0 %v2076
          %2082 = vmatprep.subr.mxu0 0.0
          %2083 = vmatpush1.msra.mxu0 0.0
          %2084 = vmatprep.subr.mxu0 0.0
          %2085 = vmatpush1.msra.mxu0 0.0
          %2086 = vmatprep.subr.mxu0 0.0
          %2087 = vmatpush1.msra.mxu0 0.0
          %2088 = vmatprep.subr.mxu0 0.0
          %2089 = vmatpush1.msra.mxu0 0.0
          %2090 = vmatprep.subr.mxu0 0.0
          %2091 = vmatpush1.msra.mxu0 0.0
          %2092 = vmatprep.subr.mxu0 0.0
          %2093 = vmatpush1.msra.mxu0 0.0
          %2094 = vmatprep.subr.mxu0 0.0
          %2095 = vmatpush1.msra.mxu0 0.0
          %2096 = vmatprep.subr.mxu0 0.0
          %2097 = vmatpush1.msra.mxu0 0.0
          %2098 = vmatprep.subr.mxu0 0.0
          %2099 = vmatpush1.msra.mxu0 0.0
          %2100 = vmatprep.subr.mxu0 0.0
          %2101 = vmatpush1.msra.mxu0 0.0
          %2102 = vmatprep.subr.mxu0 0.0
          %2103 = vmatpush1.msra.mxu0 0.0
          %2104 = vmatprep.subr.mxu0 0.0
          %2105 = vmatpush1.msra.mxu0 0.0
          %2106 = vmatprep.subr.mxu0 0.0
          %2107 = vmatpush1.msra.mxu0 0.0
          %2108 = vmatprep.subr.mxu0 0.0
          %2109 = vmatpush1.msra.mxu0 0.0
          %2110 = vmatprep.subr.mxu0 0.0
          %2111 = vmatpush1.msra.mxu0 0.0
          %2112 = vmatprep.subr.mxu0 0.0
          %2113 = vmatpush1.msra.mxu0 0.0
          %2114 = vmatprep.subr.mxu0 0.0
          %2115 = vmatpush1.msra.mxu0 0.0
          %2116 = vmatprep.subr.mxu0 0.0
          %2117 = vmatpush1.msra.mxu0 0.0
          %2118 = vmatprep.subr.mxu0 0.0
          %2119 = vmatpush1.msra.mxu0 0.0
          %2120 = vmatprep.subr.mxu0 0.0
          %2121 = vmatpush1.msra.mxu0 0.0
          %2122 = vmatprep.subr.mxu0 0.0
          %2123 = vmatpush1.msra.mxu0 0.0
          %2124 = vmatprep.subr.mxu0 0.0
          %2125 = vmatpush1.msra.mxu0 0.0
          %2126 = vmatprep.subr.mxu0 0.0
          %2127 = vmatpush1.msra.mxu0 0.0
          %2128 = vmatprep.subr.mxu0 0.0
          %2129 = vmatpush1.msra.mxu0 0.0
          %2130 = vmatprep.subr.mxu0 0.0
          %2131 = vmatpush1.msra.mxu0 0.0
          %2132 = vmatprep.subr.mxu0 0.0
          %2133 = vmatpush1.msra.mxu0 0.0
          %2134 = vmatprep.subr.mxu0 0.0
          %2135 = vmatpush1.msra.mxu0 0.0
          %2136 = vmatprep.subr.mxu0 0.0
          %2137 = vmatpush1.msra.mxu0 0.0
          %2138 = vmatprep.subr.mxu0 0.0
          %2139 = vmatpush1.msra.mxu0 0.0
          %2140 = vmatprep.subr.mxu0 0.0
          %2141 = vmatpush1.msra.mxu0 0.0
          %2142 = vmatprep.subr.mxu0 0.0
          %2143 = vmatpush1.msra.mxu0 0.0
          %2144 = vmatprep.mubr.f32.mxu0 0.0
          %2145 = vmatmul.mubr.f32.gmra.mrb[0].mxu0 %v2078
          %v2146 = vpop.f32.mrb[0].mxu0
          %v2147 = vadd.f32 0.0, %v2146
          %v2148 = vpop.f32.mrb[0].mxu0
          %2149 = vdwg.mxu0
          %2150 = vst.msk [vmem:[%s362] sm:$0xff] %vm392, %v2147
        $region76: #{tpu_custom_call.1} parent=43 // pred_fallthru
          _
        %p2151 = scmp.lt.s32.totalorder %s31, 1
        %s2152 = scalar_select %p2151, %s31, 1
        %s2153 = smul.addr %s2152, 8
        %s2154 = scalar_lea.vmem %s6, %s2153
        %s2155 = sand.u32 %s206, 1
        %s2156 = scalar_lea.sflag [#allocation5], %s2155
        %s2157 = sand.u32 %s206, 1
        %s2158 = smul.addr %s2157, 8
        %s2159 = scalar_lea.vmem [#allocation11], %s2158
        // Predicated region
        $region77: #{tpu_custom_call.1} parent=43 // pred_check
          %p2160 = pneg %p190
        $region78: #{tpu_custom_call.1} parent=43 // pred_check_branch
          %2162 = sbr.rel (%p2160) target = $region80
        $region79: #{tpu_custom_call.1} parent=43 // pred_region
          _
        $region80: #{tpu_custom_call.1} parent=43 // pred_fallthru
          _
        // Predicated region
        $region81: #{tpu_custom_call.1} parent=43 // pred_check
          %p2163 = pneg %p216
        $region82: #{tpu_custom_call.1} parent=43 // pred_check_branch
          %2165 = sbr.rel (%p2163) target = $region84
        $region83: #{tpu_custom_call.1} parent=43 // pred_region
          %s2167 = ssub.s32 128, 128
          %2168 = vsyncadd %s2156, %s2167
          %s2169 = smul.addr %s31, 128
          %s2170 = scalar_lea.hbm %s7, %s2169
          %s2172 = sshll.u32 %s2159, 4
          %s2173 = int_to_ptr.vmem [resolvable:$true] %s2172
          %2175 = dma.vmem_to_hbm [thread:$0]  %s2173, 128, %s2170, %s2156
        $region84: #{tpu_custom_call.1} parent=43 // pred_fallthru
          _
      $region44: #{tpu_custom_call.1} parent=5 // pred_fallthru
        _
      %p2176 = scmp.le.s32.totalorder 2, %s22
      // Predicated region
      $region85: #{tpu_custom_call.1} parent=5 // pred_check
        %p2177 = pneg %p2176
      $region86: #{tpu_custom_call.1} parent=5 // pred_check_branch
        %2179 = sbr.rel (%p2177) target = $region88
      $region87: #{tpu_custom_call.1} parent=5 // pred_region
        %s2180 = ssub.s32 %s22, 2
        // Predicated region
        $region89: #{tpu_custom_call.1} parent=87 // pred_check
          %p2181 = pneg %p196
        $region90: #{tpu_custom_call.1} parent=87 // pred_check_branch
          %2183 = sbr.rel (%p2181) target = $region92
        $region91: #{tpu_custom_call.1} parent=87 // pred_region
          %p2184 = scmp.lt.s32.totalorder %s33, 1
          %s2185 = scalar_select %p2184, %s33, 1
          %s2186 = smul.addr %s2185, 8
          %s2187 = scalar_lea.vmem %s6, %s2186
        $region92: #{tpu_custom_call.1} parent=87 // pred_fallthru
          _
        // Predicated region
        $region93: #{tpu_custom_call.1} parent=87 // pred_check
          %p2188 = pneg %p222
        $region94: #{tpu_custom_call.1} parent=87 // pred_check_branch
          %2190 = sbr.rel (%p2188) target = $region96
        $region95: #{tpu_custom_call.1} parent=87 // pred_region
          %s2191 = sand.u32 %s207, 1
          %s2192 = scalar_lea.sflag [#allocation5], %s2191
          %s2193 = sand.u32 %s207, 1
          %s2194 = smul.addr %s2193, 8
          %s2195 = scalar_lea.vmem [#allocation11], %s2194
          %2196 = dma.done %s2192, 128
        $region96: #{tpu_custom_call.1} parent=87 // pred_fallthru
          _
      $region88: #{tpu_custom_call.1} parent=5 // pred_fallthru
        _
    $region6: #{tpu_custom_call.1} parent=1 // loop_footer
      %s26 = sadd.s32 1, %s22
    $region7: #{tpu_custom_call.1} parent=1 // loop_footer_branch
      %21 = sbr.rel target = $region3
    $region8: #{tpu_custom_call.1} parent=1 // loop_exit
      _
    %2197 = vsyncpa [#allocation4], 1
    %s2198 = scalar_lea.sflag [#allocation4], 1
    %2199 = vsyncpa %s2198, 1
    %2200 = vsyncpa [#allocation7], 1
    %2201 = vsyncpa [#allocation10], 1
    %2202 = vsyncpa [#allocation5], 1
    %s2203 = scalar_lea.sflag [#allocation5], 1
    %2204 = vsyncpa %s2203, 1

</llo_original>
